<compile_context>
chip_gen: v7x
topology: tpu7x:2x2x1
jax: 0.10.0
libtpu: 0.0.40
codegen_flags: <defaults>
</compile_context>

<pallas_src>
import functools

import jax
import jax.numpy as jnp
import numpy as np
from jax import lax
from jax.experimental import pallas as pl
from jax.experimental.pallas import tpu as pltpu

_NEG_LARGE = -1e30      # finite "minus infinity" for the masked running max


def _stats_kernel(labels_ref, feat_ref, mem_ref, *rest, inv_tau, cap,
                  num_classes, col_tile, tiles_per_split, n_valid_cols,
                  n_padded_cols, pow2_classes):
    """One (batch-tile, column-split, column-tile) step.

    labels_ref : (TB, 1)  int32   class label per row
    feat_ref   : (TB, D)  f32     raw features (normalized once per row tile)
    mem_ref    : (D, TN)  bf16    column tile of the transposed flattened bank
    colmod_ref : (1, TN)  int32   col % C  (only when C is not a power of two)
    m/s/p_out  : (TB, 128) f32    masked running max / exp-sum / positive sum
                                  (lane-broadcast, written on the last tile)
    fn_scr     : (TB, D)  bf16    normalized features * (1/tau)
    m/s/p_scr  : (TB, 1)  f32     online-softmax state
    """
    if pow2_classes:
        m_out, s_out, p_out, fn_scr, m_scr, s_scr, p_scr = rest
        colmod_ref = None
    else:
        colmod_ref, m_out, s_out, p_out, fn_scr, m_scr, s_scr, p_scr = rest

    si = pl.program_id(1)
    ci = pl.program_id(2)

    @pl.when(ci == 0)
    def _init():
        m_scr[...] = jnp.full(m_scr.shape, _NEG_LARGE, jnp.float32)
        s_scr[...] = jnp.zeros(s_scr.shape, jnp.float32)
        p_scr[...] = jnp.zeros(p_scr.shape, jnp.float32)
        # torch F.normalize(x, p=2, dim=-1): x / max(||x||, 1e-12).  The 1/tau
        # logit scale is folded into the cached bf16 operand (rsqrt -> EUP).
        feat = feat_ref[...]
        sq = jnp.sum(feat * feat, axis=-1, keepdims=True)
        fn = feat * (lax.rsqrt(jnp.maximum(sq, 1e-24)) * inv_tau)
        fn_scr[...] = fn.astype(fn_scr.dtype)

    labels = labels_ref[...]                                        # (TB, 1)

    # Logits of this column tile (1/tau already folded in): bf16 x bf16 -> f32.
    logits = jnp.dot(fn_scr[...], mem_ref[...],
                     preferred_element_type=jnp.float32)            # (TB, TN)

    # In-kernel column metadata (no extra DMA stream).
    base = (si * tiles_per_split + ci) * col_tile
    col = base + lax.broadcasted_iota(jnp.int32, (1, col_tile), 1)  # (1, TN)

    # Positive columns = the `cap` contiguous class-major columns of the label
    # class; their mean is exactly (feat @ centroid)/tau, reused from the same
    # matmul output.  Range compare avoids any integer division.
    lo = labels * cap
    is_pos = (col >= lo) & (col < lo + cap)                         # (TB, TN)
    p_scr[...] += jnp.sum(jnp.where(is_pos, logits, 0.0), axis=-1, keepdims=True)

    # Reference quirk (cap-major mask applied to class-major logits):
    # negatives keep columns with (col % C) != label.
    if pow2_classes:
        col_mod = jnp.bitwise_and(col, num_classes - 1)
    else:
        col_mod = colmod_ref[...]
    keep = col_mod != labels                                        # (TB, TN)
    if n_padded_cols > n_valid_cols:
        keep = keep & (col < n_valid_cols)

    # Online logsumexp over kept negatives using the MASKED tile max
    # (correctness fix: masked columns can no longer underflow the exp-sum).
    neg = jnp.where(keep, logits, _NEG_LARGE)
    m_new = jnp.maximum(m_scr[...], jnp.max(neg, axis=-1, keepdims=True))
    s_scr[...] = s_scr[...] * jnp.exp(m_scr[...] - m_new) + jnp.sum(
        jnp.where(keep, jnp.exp(logits - m_new), 0.0), axis=-1, keepdims=True)
    m_scr[...] = m_new

    @pl.when(ci == pl.num_programs(2) - 1)
    def _finalize():
        lanes = m_out.shape[-1]
        rows = m_scr.shape[0]
        m_out[...] = jnp.broadcast_to(m_scr[...], (rows, lanes))
        s_out[...] = jnp.broadcast_to(s_scr[...], (rows, lanes))
        p_out[...] = jnp.broadcast_to(p_scr[...], (rows, lanes))


def _update_memory(memory, x, classes):
    """Functional version of memory_bank_func.update (plain-JAX glue).

    For each class c: new instances of class c (original order) are prepended
    to memory[c] and the first `cap` rows kept.  Classes with no new instances
    are unchanged; class id == num_classes is never selected."""
    num_classes, cap, _ = memory.shape
    b = x.shape[0]
    row_ids = jnp.arange(b)
    new_banks = []
    for cls in range(num_classes):
        is_cls = classes == cls
        count = jnp.sum(is_cls.astype(jnp.int32))
        key = jnp.where(is_cls, row_ids, b + row_ids)     # class rows first, stable
        order = jnp.argsort(key)
        selected = x[order]
        full = jnp.concatenate([selected, memory[cls]], 0)
        idx = jnp.arange(cap)
        src = jnp.where(idx < count, idx, b + idx - count)
        new_banks.append(full[src])
    return jnp.stack(new_banks, axis=0)


def _round_up(x, m):
    return ((x + m - 1) // m) * m


def _tile_budgets():
    """Per-generation (bank-tile budget, scoped-VMEM limit).  v5e/v6e report
    128 MiB VMEM; v7x has 64 MiB per TensorCore -> be more conservative."""
    try:
        vmem = int(pltpu.get_tpu_info().vmem_capacity_bytes)
    except Exception:
        vmem = 64 << 20
    if vmem >= (100 << 20):
        return 8 << 20, 64 << 20
    return 6 << 20, 32 << 20


def _choose_col_tile(n_cols, dim, row_tile, bank_budget):
    """Largest column tile whose bf16 (dim, tile) bank block fits the budget
    and whose (row_tile, tile) f32 intermediates stay ~2 MiB; the whole bank
    goes in one tile when it fits (per-grid-step overhead is pure loss)."""
    max_tn_bank = bank_budget // (dim * 2)
    max_tn_inter = (2 << 20) // (row_tile * 4)
    max_tn = max(128, min(max_tn_bank, max_tn_inter))
    if n_cols <= max_tn:
        return n_cols
    return (max_tn // 128) * 128


def memory_bank_forward(memory, x, classes, tau=1.0, col_tile=None,
                        row_tile=128, n_splits=None):
    """Equivalent of memory_bank_func.forward: update the bank, then the
    contrastive CE loss.  Returns (loss, new_memory) (JAX is functional)."""
    num_classes, cap, dim = memory.shape
    b = x.shape[0]
    n_cols = num_classes * cap

    new_memory = _update_memory(memory, x, classes)

    bank_budget, vmem_limit = _tile_budgets()

    # --- batch tiling: pad the MXU M dimension to >= 128 rows ----------------
    padded_b = _round_up(b, row_tile)
    nb = padded_b // row_tile
    feat = jnp.zeros((padded_b, dim), jnp.float32).at[:b].set(x.astype(jnp.float32))
    labels2d = jnp.zeros((padded_b, 1), jnp.int32).at[:b, 0].set(classes.astype(jnp.int32))

    # --- column tiling of the class-major flattened, transposed bf16 bank ----
    if col_tile is None:
        col_tile = _choose_col_tile(n_cols, dim, row_tile, bank_budget)
    col_tile = int(min(col_tile, n_cols))
    if col_tile < n_cols:
        assert col_tile % 128 == 0, "partial column tiles must be multiples of 128"
    n_col_tiles = int(pl.cdiv(n_cols, col_tile))
    n_padded_cols = n_col_tiles * col_tile

    mem_t = jnp.transpose(new_memory.reshape(n_cols, dim)).astype(jnp.bfloat16)
    if n_padded_cols > n_cols:
        mem_t = jnp.pad(mem_t, ((0, 0), (0, n_padded_cols - n_cols)))

    # Split the column range across a second "parallel" axis when the batch
    # axis alone would leave v7x's second TensorCore idle.
    if n_splits is None:
        n_splits = 2 if (nb == 1 and n_col_tiles >= 2 and n_col_tiles % 2 == 0) else 1
    assert n_col_tiles % n_splits == 0
    tiles_per_split = n_col_tiles // n_splits

    pow2_classes = num_classes >= 1 and (num_classes & (num_classes - 1)) == 0

    in_specs = [
        pl.BlockSpec((row_tile, 1), lambda bi, si, ci: (bi, 0)),        # labels
        pl.BlockSpec((row_tile, dim), lambda bi, si, ci: (bi, 0)),      # features
        pl.BlockSpec((dim, col_tile),
                     lambda bi, si, ci: (0, si * tiles_per_split + ci)),  # bank
    ]
    inputs = [labels2d, feat, mem_t]
    if not pow2_classes:
        colmod = jnp.arange(n_cols, dtype=jnp.int32) % num_classes
        colmod = (jnp.full((1, n_padded_cols), num_classes, jnp.int32)
                  .at[0, :n_cols].set(colmod))
        in_specs.append(pl.BlockSpec(
            (1, col_tile), lambda bi, si, ci: (0, si * tiles_per_split + ci)))
        inputs.append(colmod)

    out_lane = 128
    out_sds = jax.ShapeDtypeStruct((padded_b, n_splits * out_lane), jnp.float32)
    out_spec = pl.BlockSpec((row_tile, out_lane), lambda bi, si, ci: (bi, si))

    kernel = functools.partial(
        _stats_kernel, inv_tau=float(1.0 / tau), cap=int(cap),
        num_classes=int(num_classes), col_tile=int(col_tile),
        tiles_per_split=int(tiles_per_split), n_valid_cols=int(n_cols),
        n_padded_cols=int(n_padded_cols), pow2_classes=bool(pow2_classes))

    # TODO(synk): sweep pipeline_mode=pl.Buffered(3) on the bank BlockSpec if
    # profiling ever shows exposed DMA at small column tiles.
    m_o, s_o, p_o = pl.pallas_call(
        kernel,
        out_shape=(out_sds, out_sds, out_sds),
        grid_spec=pltpu.PrefetchScalarGridSpec(
            num_scalar_prefetch=0,
            grid=(nb, n_splits, tiles_per_split),        # reduction innermost
            in_specs=in_specs,
            out_specs=(out_spec, out_spec, out_spec),
            scratch_shapes=[pltpu.VMEM((row_tile, dim), jnp.bfloat16),  # feat_n/tau
                            pltpu.VMEM((row_tile, 1), jnp.float32),     # running max
                            pltpu.VMEM((row_tile, 1), jnp.float32),     # exp-sum
                            pltpu.VMEM((row_tile, 1), jnp.float32)],    # positive sum
        ),
        compiler_params=pltpu.CompilerParams(
            dimension_semantics=("parallel", "parallel", "arbitrary"),
            vmem_limit_bytes=vmem_limit),
    )(*inputs)

    # Tiny cross-split / final-softmax combine in plain JAX.
    def lane0(a):
        return a.reshape(padded_b, n_splits, out_lane)[:, :, 0]
    m, s, p = lane0(m_o), lane0(s_o), lane0(p_o)
    pos = jnp.sum(p, axis=1) * (1.0 / cap)                  # mean over cap columns
    mm = jnp.max(m, axis=1)
    s_tot = jnp.sum(s * jnp.exp(m - mm[:, None]), axis=1)
    big = jnp.maximum(mm, pos)
    loss_i = big + jnp.log(s_tot * jnp.exp(mm - big) + jnp.exp(pos - big)) - pos
    return jnp.mean(loss_i[:b]), new_memory


def _ref_loss(new_memory, x, classes, tau):
    """Pure-JAX replica of memory_bank_func.call_loss (validation only)."""
    num_classes, cap, dim = new_memory.shape
    b = x.shape[0]
    feat = x / jnp.maximum(jnp.linalg.norm(x, axis=-1, keepdims=True), 1e-12)
    cent = new_memory.mean(axis=1)
    pos = (jnp.matmul(feat, cent.T, precision=lax.Precision.HIGHEST) / tau
           )[jnp.arange(b), classes]
    logits = jnp.matmul(feat, new_memory.reshape(-1, dim).T,
                        precision=lax.Precision.HIGHEST) / tau
    col = jnp.arange(num_classes * cap)
    keep = (col[None, :] % num_classes) != classes[:, None]   # reference quirk
    m = jnp.maximum(pos, jnp.max(jnp.where(keep, logits, -jnp.inf), axis=-1))
    se = jnp.exp(pos - m) + jnp.sum(
        jnp.where(keep, jnp.exp(logits - m[:, None]), 0.0), axis=-1)
    return jnp.mean(m + jnp.log(se) - pos)


if __name__ == "__main__":
    key = jax.random.PRNGKey(0)
    k_mem, k_x, k_cls, k_mem2, k_cls2 = jax.random.split(key, 5)

    # Small shapes consistent with the module: C*cap = 256, D = 128, b = 8.
    num_classes, cap, dim, batch = 4, 64, 128, 8
    memory = jax.random.normal(k_mem, (num_classes, cap, dim), dtype=jnp.float32)
    x = jax.random.normal(k_x, (batch, dim), dtype=jnp.float32)
    classes = jax.random.randint(k_cls, (batch,), 0, num_classes, dtype=jnp.int32)

    ref = _ref_loss(_update_memory(memory, x, classes), x, classes, 1.0)

    # (a) auto tiling: the tiny bank fits a single column tile.
    fwd = jax.jit(functools.partial(memory_bank_forward, tau=1.0))
    loss_a, new_memory = fwd(memory, x, classes)
    jax.block_until_ready((loss_a, new_memory))
    np.testing.assert_allclose(np.asarray(loss_a), np.asarray(ref), rtol=5e-2, atol=5e-2)
    assert loss_a.shape == () and bool(jnp.isfinite(loss_a))
    assert new_memory.shape == (num_classes, cap, dim)

    # (b) forced 128-wide column tiles -> 2 tiles, 2-way "parallel" column
    #     split (multi-tile online softmax + v7x second-core path).
    fwd_b = jax.jit(functools.partial(memory_bank_forward, tau=1.0, col_tile=128))
    loss_b, _ = fwd_b(memory, x, classes)
    jax.block_until_ready(loss_b)
    np.testing.assert_allclose(np.asarray(loss_b), np.asarray(ref), rtol=5e-2, atol=5e-2)

    # (c) non-power-of-two class count -> 1-row col%C side input + column
    #     padding (n_cols = 192 padded to 256 with 128-wide tiles).
    num_classes_c = 3
    memory_c = jax.random.normal(k_mem2, (num_classes_c, cap, dim), dtype=jnp.float32)
    classes_c = jax.random.randint(k_cls2, (batch,), 0, num_classes_c, dtype=jnp.int32)
    ref_c = _ref_loss(_update_memory(memory_c, x, classes_c), x, classes_c, 1.0)
    fwd_c = jax.jit(functools.partial(memory_bank_forward, tau=1.0, col_tile=128))
    loss_c, _ = fwd_c(memory_c, x, classes_c)
    jax.block_until_ready(loss_c)
    np.testing.assert_allclose(np.asarray(loss_c), np.asarray(ref_c), rtol=5e-2, atol=5e-2)

    print("KERNEL_OK")
</pallas_src>

<mosaic_0001>
module attributes {stable_mosaic.version = 11 : i64} {
  func.func @_stats_kernel(%arg0: i32, %arg1: i32, %arg2: i32, %arg3: memref<128x1xi32, #tpu.memory_space<vmem>>, %arg4: memref<128x128xf32, #tpu.memory_space<vmem>>, %arg5: memref<128x256xbf16, #tpu.memory_space<vmem>>, %arg6: memref<128x128xf32, #tpu.memory_space<vmem>>, %arg7: memref<128x128xf32, #tpu.memory_space<vmem>>, %arg8: memref<128x128xf32, #tpu.memory_space<vmem>>, %arg9: memref<128x128xbf16, #tpu.memory_space<vmem>>, %arg10: memref<128x1xf32, #tpu.memory_space<vmem>>, %arg11: memref<128x1xf32, #tpu.memory_space<vmem>>, %arg12: memref<128x1xf32, #tpu.memory_space<vmem>>) attributes {dimension_semantics = [#tpu.dimension_semantics<parallel>, #tpu.dimension_semantics<parallel>, #tpu.dimension_semantics<arbitrary>], iteration_bounds = array<i64: 1, 1, 1>, scalar_prefetch = 0 : i64, scratch_operands = 4 : i64, tpu.core_type = #tpu.core_type<tc>, window_params = [{transform_indices = @transform_0, window_bounds = array<i64: 128, 1>}, {transform_indices = @transform_1, window_bounds = array<i64: 128, 128>}, {transform_indices = @transform_2, window_bounds = array<i64: 128, 256>}, {transform_indices = @transform_3, window_bounds = array<i64: 128, 128>}, {transform_indices = @transform_4, window_bounds = array<i64: 128, 128>}, {transform_indices = @transform_5, window_bounds = array<i64: 128, 128>}]} {
    %c0_i32 = arith.constant 0 : i32
    %0 = arith.cmpi eq, %arg2, %c0_i32 : i32
    %1 = arith.extui %0 : i1 to i32
    %c0_i32_0 = arith.constant 0 : i32
    %2 = arith.cmpi ne, %1, %c0_i32_0 : i32
    scf.if %2 {
      %cst_29 = arith.constant -1.000000e+30 : f32
      %60 = vector.broadcast %cst_29 : f32 to vector<128x1xf32>
      %c0_30 = arith.constant 0 : index
      %c0_31 = arith.constant 0 : index
      %61 = vector.load %arg10[%c0_30, %c0_31] : memref<128x1xf32, #tpu.memory_space<vmem>>, vector<128x1xf32>
      tpu.vector_store %arg10[%c0_30, %c0_31], %60 {strides = array<i32>} : memref<128x1xf32, #tpu.memory_space<vmem>>, vector<128x1xf32>,
      %cst_32 = arith.constant 0.000000e+00 : f32
      %62 = vector.broadcast %cst_32 : f32 to vector<128x1xf32>
      %c0_33 = arith.constant 0 : index
      %c0_34 = arith.constant 0 : index
      %63 = vector.load %arg11[%c0_33, %c0_34] : memref<128x1xf32, #tpu.memory_space<vmem>>, vector<128x1xf32>
      tpu.vector_store %arg11[%c0_33, %c0_34], %62 {strides = array<i32>} : memref<128x1xf32, #tpu.memory_space<vmem>>, vector<128x1xf32>,
      %cst_35 = arith.constant 0.000000e+00 : f32
      %64 = vector.broadcast %cst_35 : f32 to vector<128x1xf32>
      %c0_36 = arith.constant 0 : index
      %c0_37 = arith.constant 0 : index
      %65 = vector.load %arg12[%c0_36, %c0_37] : memref<128x1xf32, #tpu.memory_space<vmem>>, vector<128x1xf32>
      tpu.vector_store %arg12[%c0_36, %c0_37], %64 {strides = array<i32>} : memref<128x1xf32, #tpu.memory_space<vmem>>, vector<128x1xf32>,
      %c0_38 = arith.constant 0 : index
      %c0_39 = arith.constant 0 : index
      %66 = vector.load %arg4[%c0_38, %c0_39] : memref<128x128xf32, #tpu.memory_space<vmem>>, vector<128x128xf32>
      %67 = arith.mulf %66, %66 : vector<128x128xf32>
      %cst_40 = arith.constant dense<0.000000e+00> : vector<128xf32>
      %68 = vector.multi_reduction <add>, %67, %cst_40 [1] : vector<128x128xf32> to vector<128xf32>
      %69 = vector.shape_cast %68 : vector<128xf32> to vector<128x1xf32>
      %cst_41 = arith.constant 1.000000e-24 : f32
      %70 = vector.broadcast %cst_41 : f32 to vector<128x1xf32>
      %71 = arith.maximumf %69, %70 : vector<128x1xf32>
      %72 = math.rsqrt %71 : vector<128x1xf32>
      %cst_42 = arith.constant 1.000000e+00 : f32
      %73 = vector.broadcast %cst_42 : f32 to vector<128x1xf32>
      %74 = arith.mulf %72, %73 : vector<128x1xf32>
      %75 = vector.broadcast %74 : vector<128x1xf32> to vector<128x128xf32>
      %76 = arith.mulf %66, %75 : vector<128x128xf32>
      %77 = arith.truncf %76 : vector<128x128xf32> to vector<128x128xbf16>
      %c0_43 = arith.constant 0 : index
      %c0_44 = arith.constant 0 : index
      %78 = vector.load %arg9[%c0_43, %c0_44] : memref<128x128xbf16, #tpu.memory_space<vmem>>, vector<128x128xbf16>
      tpu.vector_store %arg9[%c0_43, %c0_44], %77 {strides = array<i32>} : memref<128x128xbf16, #tpu.memory_space<vmem>>, vector<128x128xbf16>,
    } else {
    }
    %c0 = arith.constant 0 : index
    %c0_1 = arith.constant 0 : index
    %3 = vector.load %arg3[%c0, %c0_1] : memref<128x1xi32, #tpu.memory_space<vmem>>, vector<128x1xi32>
    %c0_2 = arith.constant 0 : index
    %c0_3 = arith.constant 0 : index
    %4 = vector.load %arg9[%c0_2, %c0_3] : memref<128x128xbf16, #tpu.memory_space<vmem>>, vector<128x128xbf16>
    %c0_4 = arith.constant 0 : index
    %c0_5 = arith.constant 0 : index
    %5 = vector.load %arg5[%c0_4, %c0_5] : memref<128x256xbf16, #tpu.memory_space<vmem>>, vector<128x256xbf16>
    %cst = arith.constant dense<0.000000e+00> : vector<128x256xf32>
    %6 = tpu.matmul %4, %5, %cst {dimension_numbers = #tpu.dot_dimension_numbers<[1], [0], [0], [1], [0, 0, 1, 1], [], []>} : vector<128x128xbf16>, vector<128x256xbf16>, vector<128x256xf32> -> vector<128x256xf32>
    %c1_i32 = arith.constant 1 : i32
    %7 = arith.muli %arg1, %c1_i32 : i32
    %8 = arith.addi %7, %arg2 : i32
    %c256_i32 = arith.constant 256 : i32
    %9 = arith.muli %8, %c256_i32 : i32
    %10 = tpu.iota {dimensions = array<i32: 1>} : vector<1x256xi32>
    %11 = vector.broadcast %9 : i32 to vector<1x256xi32>
    %12 = arith.addi %11, %10 : vector<1x256xi32>
    %c64_i32 = arith.constant 64 : i32
    %13 = vector.broadcast %c64_i32 : i32 to vector<128x1xi32>
    %14 = arith.muli %3, %13 : vector<128x1xi32>
    %15 = vector.broadcast %12 : vector<1x256xi32> to vector<128x256xi32>
    %16 = vector.broadcast %14 : vector<128x1xi32> to vector<128x256xi32>
    %17 = arith.cmpi sge, %15, %16 : vector<128x256xi32>
    %c64_i32_6 = arith.constant 64 : i32
    %18 = vector.broadcast %c64_i32_6 : i32 to vector<128x1xi32>
    %19 = arith.addi %14, %18 : vector<128x1xi32>
    %20 = vector.broadcast %12 : vector<1x256xi32> to vector<128x256xi32>
    %21 = vector.broadcast %19 : vector<128x1xi32> to vector<128x256xi32>
    %22 = arith.cmpi slt, %20, %21 : vector<128x256xi32>
    %23 = arith.andi %17, %22 : vector<128x256xi1>
    %c0_7 = arith.constant 0 : index
    %c0_8 = arith.constant 0 : index
    %24 = vector.load %arg12[%c0_7, %c0_8] : memref<128x1xf32, #tpu.memory_space<vmem>>, vector<128x1xf32>
    %cst_9 = arith.constant 0.000000e+00 : f32
    %25 = vector.broadcast %cst_9 : f32 to vector<128x256xf32>
    %26 = arith.select %23, %6, %25 : vector<128x256xi1>, vector<128x256xf32>
    %cst_10 = arith.constant dense<0.000000e+00> : vector<128xf32>
    %27 = vector.multi_reduction <add>, %26, %cst_10 [1] : vector<128x256xf32> to vector<128xf32>
    %28 = vector.shape_cast %27 : vector<128xf32> to vector<128x1xf32>
    %29 = arith.addf %24, %28 : vector<128x1xf32>
    %c0_11 = arith.constant 0 : index
    %c0_12 = arith.constant 0 : index
    %30 = vector.load %arg12[%c0_11, %c0_12] : memref<128x1xf32, #tpu.memory_space<vmem>>, vector<128x1xf32>
    tpu.vector_store %arg12[%c0_11, %c0_12], %29 {strides = array<i32>} : memref<128x1xf32, #tpu.memory_space<vmem>>, vector<128x1xf32>,
    %c3_i32 = arith.constant 3 : i32
    %31 = vector.broadcast %c3_i32 : i32 to vector<1x256xi32>
    %32 = arith.andi %12, %31 : vector<1x256xi32>
    %33 = vector.broadcast %32 : vector<1x256xi32> to vector<128x256xi32>
    %34 = vector.broadcast %3 : vector<128x1xi32> to vector<128x256xi32>
    %35 = arith.cmpi ne, %33, %34 : vector<128x256xi32>
    %cst_13 = arith.constant -1.000000e+30 : f32
    %36 = vector.broadcast %cst_13 : f32 to vector<128x256xf32>
    %37 = arith.select %35, %6, %36 : vector<128x256xi1>, vector<128x256xf32>
    %c0_14 = arith.constant 0 : index
    %c0_15 = arith.constant 0 : index
    %38 = vector.load %arg10[%c0_14, %c0_15] : memref<128x1xf32, #tpu.memory_space<vmem>>, vector<128x1xf32>
    %cst_16 = arith.constant dense<0xFF800000> : vector<128xf32>
    %39 = vector.multi_reduction <maximumf>, %37, %cst_16 [1] : vector<128x256xf32> to vector<128xf32>
    %40 = vector.shape_cast %39 : vector<128xf32> to vector<128x1xf32>
    %41 = arith.maximumf %38, %40 : vector<128x1xf32>
    %c0_17 = arith.constant 0 : index
    %c0_18 = arith.constant 0 : index
    %42 = vector.load %arg11[%c0_17, %c0_18] : memref<128x1xf32, #tpu.memory_space<vmem>>, vector<128x1xf32>
    %c0_19 = arith.constant 0 : index
    %c0_20 = arith.constant 0 : index
    %43 = vector.load %arg10[%c0_19, %c0_20] : memref<128x1xf32, #tpu.memory_space<vmem>>, vector<128x1xf32>
    %44 = arith.subf %43, %41 : vector<128x1xf32>
    %45 = math.exp %44 : vector<128x1xf32>
    %46 = arith.mulf %42, %45 : vector<128x1xf32>
    %47 = vector.broadcast %41 : vector<128x1xf32> to vector<128x256xf32>
    %48 = arith.subf %6, %47 : vector<128x256xf32>
    %49 = math.exp %48 : vector<128x256xf32>
    %cst_21 = arith.constant 0.000000e+00 : f32
    %50 = vector.broadcast %cst_21 : f32 to vector<128x256xf32>
    %51 = arith.select %35, %49, %50 : vector<128x256xi1>, vector<128x256xf32>
    %cst_22 = arith.constant dense<0.000000e+00> : vector<128xf32>
    %52 = vector.multi_reduction <add>, %51, %cst_22 [1] : vector<128x256xf32> to vector<128xf32>
    %53 = vector.shape_cast %52 : vector<128xf32> to vector<128x1xf32>
    %54 = arith.addf %46, %53 : vector<128x1xf32>
    %c0_23 = arith.constant 0 : index
    %c0_24 = arith.constant 0 : index
    %55 = vector.load %arg11[%c0_23, %c0_24] : memref<128x1xf32, #tpu.memory_space<vmem>>, vector<128x1xf32>
    tpu.vector_store %arg11[%c0_23, %c0_24], %54 {strides = array<i32>} : memref<128x1xf32, #tpu.memory_space<vmem>>, vector<128x1xf32>,
    %c0_25 = arith.constant 0 : index
    %c0_26 = arith.constant 0 : index
    %56 = vector.load %arg10[%c0_25, %c0_26] : memref<128x1xf32, #tpu.memory_space<vmem>>, vector<128x1xf32>
    tpu.vector_store %arg10[%c0_25, %c0_26], %41 {strides = array<i32>} : memref<128x1xf32, #tpu.memory_space<vmem>>, vector<128x1xf32>,
    %c0_i32_27 = arith.constant 0 : i32
    %57 = arith.cmpi eq, %arg2, %c0_i32_27 : i32
    %58 = arith.extui %57 : i1 to i32
    %c0_i32_28 = arith.constant 0 : i32
    %59 = arith.cmpi ne, %58, %c0_i32_28 : i32
    scf.if %59 {
      %c0_29 = arith.constant 0 : index
      %c0_30 = arith.constant 0 : index
      %60 = vector.load %arg10[%c0_29, %c0_30] : memref<128x1xf32, #tpu.memory_space<vmem>>, vector<128x1xf32>
      %61 = vector.shape_cast %60 : vector<128x1xf32> to vector<128x1xf32>
      %62 = vector.broadcast %61 : vector<128x1xf32> to vector<128x128xf32>
      %c0_31 = arith.constant 0 : index
      %c0_32 = arith.constant 0 : index
      %63 = vector.load %arg6[%c0_31, %c0_32] : memref<128x128xf32, #tpu.memory_space<vmem>>, vector<128x128xf32>
      tpu.vector_store %arg6[%c0_31, %c0_32], %62 {strides = array<i32>} : memref<128x128xf32, #tpu.memory_space<vmem>>, vector<128x128xf32>,
      %c0_33 = arith.constant 0 : index
      %c0_34 = arith.constant 0 : index
      %64 = vector.load %arg11[%c0_33, %c0_34] : memref<128x1xf32, #tpu.memory_space<vmem>>, vector<128x1xf32>
      %65 = vector.shape_cast %64 : vector<128x1xf32> to vector<128x1xf32>
      %66 = vector.broadcast %65 : vector<128x1xf32> to vector<128x128xf32>
      %c0_35 = arith.constant 0 : index
      %c0_36 = arith.constant 0 : index
      %67 = vector.load %arg7[%c0_35, %c0_36] : memref<128x128xf32, #tpu.memory_space<vmem>>, vector<128x128xf32>
      tpu.vector_store %arg7[%c0_35, %c0_36], %66 {strides = array<i32>} : memref<128x128xf32, #tpu.memory_space<vmem>>, vector<128x128xf32>,
      %c0_37 = arith.constant 0 : index
      %c0_38 = arith.constant 0 : index
      %68 = vector.load %arg12[%c0_37, %c0_38] : memref<128x1xf32, #tpu.memory_space<vmem>>, vector<128x1xf32>
      %69 = vector.shape_cast %68 : vector<128x1xf32> to vector<128x1xf32>
      %70 = vector.broadcast %69 : vector<128x1xf32> to vector<128x128xf32>
      %c0_39 = arith.constant 0 : index
      %c0_40 = arith.constant 0 : index
      %71 = vector.load %arg8[%c0_39, %c0_40] : memref<128x128xf32, #tpu.memory_space<vmem>>, vector<128x128xf32>
      tpu.vector_store %arg8[%c0_39, %c0_40], %70 {strides = array<i32>} : memref<128x128xf32, #tpu.memory_space<vmem>>, vector<128x128xf32>,
    } else {
    }
    return
  }
  func.func @transform_0(%arg0: i32, %arg1: i32, %arg2: i32) -> (i32, i32) {
    %c0_i32 = arith.constant 0 : i32
    %c0_i32_0 = arith.constant 0 : i32
    return %arg0, %c0_i32 : i32, i32
  }
  func.func @transform_1(%arg0: i32, %arg1: i32, %arg2: i32) -> (i32, i32) {
    %c0_i32 = arith.constant 0 : i32
    %c0_i32_0 = arith.constant 0 : i32
    return %arg0, %c0_i32 : i32, i32
  }
  func.func @transform_2(%arg0: i32, %arg1: i32, %arg2: i32) -> (i32, i32) {
    %c1_i32 = arith.constant 1 : i32
    %0 = arith.muli %arg1, %c1_i32 : i32
    %1 = arith.addi %0, %arg2 : i32
    %c0_i32 = arith.constant 0 : i32
    %c0_i32_0 = arith.constant 0 : i32
    return %c0_i32, %1 : i32, i32
  }
  func.func @transform_3(%arg0: i32, %arg1: i32, %arg2: i32) -> (i32, i32) {
    %c0_i32 = arith.constant 0 : i32
    return %arg0, %arg1 : i32, i32
  }
  func.func @transform_4(%arg0: i32, %arg1: i32, %arg2: i32) -> (i32, i32) {
    %c0_i32 = arith.constant 0 : i32
    return %arg0, %arg1 : i32, i32
  }
  func.func @transform_5(%arg0: i32, %arg1: i32, %arg2: i32) -> (i32, i32) {
    %c0_i32 = arith.constant 0 : i32
    return %arg0, %arg1 : i32, i32
  }
}

</mosaic_0001>

<llo_original>
// kernel: memory_bank_forward.1
$region0: #{memory_bank_forward.1}
  #allocation0 [shape = 'u32[]', space=smem, size = 0x4, offset = 0x4, fixed_abs, tag = 'smem constant byte address 0x4 - core index']
  #allocation1 [shape = 'u32[144,128]{1,0:T(1,128)}', space=vmem, size = 0x12000, scoped, tag = 'internal scratch']
  #allocation2 [shape = 'bf16[128,128]{1,0:T(16,128)(2,1)}', space=vmem, size = 0x8000, scoped, tag = 'scratch operand']
  #allocation3 [shape = 'f32[128,1]{1,0:T(8,128)}', space=vmem, size = 0x10000, scoped, tag = 'scratch operand']
  #allocation4 [shape = 'f32[128,1]{1,0:T(8,128)}', space=vmem, size = 0x10000, scoped, tag = 'scratch operand']
  #allocation5 [shape = 'f32[128,1]{1,0:T(8,128)}', space=vmem, size = 0x10000, scoped, tag = 'scratch operand']
  %s0 = inlined_call_operand.vmem [shape: s32[128,1], index: 0, kind: input, shape index: {}]
  %s1 = inlined_call_operand.vmem [shape: f32[128,128], index: 1, kind: input, shape index: {}]
  %s2 = inlined_call_operand.vmem [shape: bf16[128,256], index: 2, kind: input, shape index: {}]
  %s3 = inlined_call_operand.vmem [shape: f32[128,128], index: 3, kind: output, shape index: {0}]
  %s4 = inlined_call_operand.vmem [shape: f32[128,128], index: 4, kind: output, shape index: {1}]
  %s5 = inlined_call_operand.vmem [shape: f32[128,128], index: 5, kind: output, shape index: {2}]
  %6 = xla_tuple %s3, %s4, %s5
  %s7 = sld [smem:[#allocation0]]
  $region46: #{memory_bank_forward.1} parent=0
    _
  %s9 = ssub.s32 1, %s7
  %s10 = scalar_select 0, %s9, %s7
  // Predicated region
  $region2: #{memory_bank_forward.1} parent=0 // pred_check
    _
  $region3: #{memory_bank_forward.1} parent=0 // pred_check_branch
    %12 = sbr.rel (0) target = $region5
  $region4: #{memory_bank_forward.1} parent=0 // pred_region
    _
  $region5: #{memory_bank_forward.1} parent=0 // pred_fallthru
    _
  // Predicated region
  $region6: #{memory_bank_forward.1} parent=0 // pred_check
    _
  $region7: #{memory_bank_forward.1} parent=0 // pred_check_branch
    %14 = sbr.rel (0) target = $region9
  $region8: #{memory_bank_forward.1} parent=0 // pred_region
    _
  $region9: #{memory_bank_forward.1} parent=0 // pred_fallthru
    _
  // Predicated region
  $region10: #{memory_bank_forward.1} parent=0 // pred_check
    _
  $region11: #{memory_bank_forward.1} parent=0 // pred_check_branch
    %16 = sbr.rel (0) target = $region13
  $region12: #{memory_bank_forward.1} parent=0 // pred_region
    %s17 = sadd.s32 0, 0
    %s18 = smul.u32 2, %s17
    %p19 = scmp.lt.s32.totalorder %s18, 1
    %s20 = scalar_select %p19, %s18, 1
    %s21 = smul.addr %s20, 4
    %s22 = scalar_lea.vmem %s2, %s21
    %s23 = sadd.s32 0, 0
    %s24 = smul.u32 2, %s23
  $region13: #{memory_bank_forward.1} parent=0 // pred_fallthru
    _
  %s25 = sadd.s32 0, 0
  %s26 = smul.u32 2, %s25
  %p27 = scmp.lt.s32.totalorder %s26, 1
  %s28 = scalar_select %p27, %s26, 1
  %s29 = smul.addr %s28, 4
  %s30 = scalar_lea.vmem %s2, %s29
  %s31 = sadd.s32 0, 0
  %s32 = smul.u32 2, %s31
  %p33 = scmp.lt.s32.totalorder %s32, 1
  %s34 = scalar_select %p33, %s32, 1
  %s35 = smul.addr %s34, 4
  %s36 = scalar_lea.vmem %s2, %s35
  %s37 = sadd.s32 0, 0
  %s38 = smul.u32 2, %s37
  %p40 = scmp.eq.s32.totalorder 0, 0
  // Predicated region
  $region14: #{memory_bank_forward.1} parent=0 // pred_check
    %p41 = pneg %p40
  $region15: #{memory_bank_forward.1} parent=0 // pred_check_branch
    %43 = sbr.rel (%p41) target = $region17
  $region16: #{memory_bank_forward.1} parent=0 // pred_region
    %vm44 = vcmask 7168
    %45 = vst.msk [vmem:[#allocation3] sm:$0xff] %vm44, -1e+30
    %46 = vst.msk [vmem:[#allocation3 + $0x8] sm:$0xff] %vm44, -1e+30
    %47 = vst.msk [vmem:[#allocation3 + $0x10] sm:$0xff] %vm44, -1e+30
    %48 = vst.msk [vmem:[#allocation3 + $0x18] sm:$0xff] %vm44, -1e+30
    %49 = vst.msk [vmem:[#allocation3 + $0x20] sm:$0xff] %vm44, -1e+30
    %50 = vst.msk [vmem:[#allocation3 + $0x28] sm:$0xff] %vm44, -1e+30
    %51 = vst.msk [vmem:[#allocation3 + $0x30] sm:$0xff] %vm44, -1e+30
    %52 = vst.msk [vmem:[#allocation3 + $0x38] sm:$0xff] %vm44, -1e+30
    %53 = vst.msk [vmem:[#allocation3 + $0x40] sm:$0xff] %vm44, -1e+30
    %54 = vst.msk [vmem:[#allocation3 + $0x48] sm:$0xff] %vm44, -1e+30
    %55 = vst.msk [vmem:[#allocation3 + $0x50] sm:$0xff] %vm44, -1e+30
    %56 = vst.msk [vmem:[#allocation3 + $0x58] sm:$0xff] %vm44, -1e+30
    %57 = vst.msk [vmem:[#allocation3 + $0x60] sm:$0xff] %vm44, -1e+30
    %58 = vst.msk [vmem:[#allocation3 + $0x68] sm:$0xff] %vm44, -1e+30
    %59 = vst.msk [vmem:[#allocation3 + $0x70] sm:$0xff] %vm44, -1e+30
    %60 = vst.msk [vmem:[#allocation3 + $0x78] sm:$0xff] %vm44, -1e+30
    %61 = vst.msk [vmem:[#allocation4] sm:$0xff] %vm44, 0.0
    %62 = vst.msk [vmem:[#allocation4 + $0x8] sm:$0xff] %vm44, 0.0
    %63 = vst.msk [vmem:[#allocation4 + $0x10] sm:$0xff] %vm44, 0.0
    %64 = vst.msk [vmem:[#allocation4 + $0x18] sm:$0xff] %vm44, 0.0
    %65 = vst.msk [vmem:[#allocation4 + $0x20] sm:$0xff] %vm44, 0.0
    %66 = vst.msk [vmem:[#allocation4 + $0x28] sm:$0xff] %vm44, 0.0
    %67 = vst.msk [vmem:[#allocation4 + $0x30] sm:$0xff] %vm44, 0.0
    %68 = vst.msk [vmem:[#allocation4 + $0x38] sm:$0xff] %vm44, 0.0
    %69 = vst.msk [vmem:[#allocation4 + $0x40] sm:$0xff] %vm44, 0.0
    %70 = vst.msk [vmem:[#allocation4 + $0x48] sm:$0xff] %vm44, 0.0
    %71 = vst.msk [vmem:[#allocation4 + $0x50] sm:$0xff] %vm44, 0.0
    %72 = vst.msk [vmem:[#allocation4 + $0x58] sm:$0xff] %vm44, 0.0
    %73 = vst.msk [vmem:[#allocation4 + $0x60] sm:$0xff] %vm44, 0.0
    %74 = vst.msk [vmem:[#allocation4 + $0x68] sm:$0xff] %vm44, 0.0
    %75 = vst.msk [vmem:[#allocation4 + $0x70] sm:$0xff] %vm44, 0.0
    %76 = vst.msk [vmem:[#allocation4 + $0x78] sm:$0xff] %vm44, 0.0
    %77 = vst.msk [vmem:[#allocation5] sm:$0xff] %vm44, 0.0
    %78 = vst.msk [vmem:[#allocation5 + $0x8] sm:$0xff] %vm44, 0.0
    %79 = vst.msk [vmem:[#allocation5 + $0x10] sm:$0xff] %vm44, 0.0
    %80 = vst.msk [vmem:[#allocation5 + $0x18] sm:$0xff] %vm44, 0.0
    %81 = vst.msk [vmem:[#allocation5 + $0x20] sm:$0xff] %vm44, 0.0
    %82 = vst.msk [vmem:[#allocation5 + $0x28] sm:$0xff] %vm44, 0.0
    %83 = vst.msk [vmem:[#allocation5 + $0x30] sm:$0xff] %vm44, 0.0
    %84 = vst.msk [vmem:[#allocation5 + $0x38] sm:$0xff] %vm44, 0.0
    %85 = vst.msk [vmem:[#allocation5 + $0x40] sm:$0xff] %vm44, 0.0
    %86 = vst.msk [vmem:[#allocation5 + $0x48] sm:$0xff] %vm44, 0.0
    %87 = vst.msk [vmem:[#allocation5 + $0x50] sm:$0xff] %vm44, 0.0
    %88 = vst.msk [vmem:[#allocation5 + $0x58] sm:$0xff] %vm44, 0.0
    %89 = vst.msk [vmem:[#allocation5 + $0x60] sm:$0xff] %vm44, 0.0
    %90 = vst.msk [vmem:[#allocation5 + $0x68] sm:$0xff] %vm44, 0.0
    %91 = vst.msk [vmem:[#allocation5 + $0x70] sm:$0xff] %vm44, 0.0
    %92 = vst.msk [vmem:[#allocation5 + $0x78] sm:$0xff] %vm44, 0.0
    %v93 = vld [vmem:[%s1] sm:$0xff]
    %v94 = vld [vmem:[%s1 + $0x8] sm:$0xff]
    %v95 = vld [vmem:[%s1 + $0x10] sm:$0xff]
    %v96 = vld [vmem:[%s1 + $0x18] sm:$0xff]
    %v97 = vld [vmem:[%s1 + $0x20] sm:$0xff]
    %v98 = vld [vmem:[%s1 + $0x28] sm:$0xff]
    %v99 = vld [vmem:[%s1 + $0x30] sm:$0xff]
    %v100 = vld [vmem:[%s1 + $0x38] sm:$0xff]
    %v101 = vld [vmem:[%s1 + $0x40] sm:$0xff]
    %v102 = vld [vmem:[%s1 + $0x48] sm:$0xff]
    %v103 = vld [vmem:[%s1 + $0x50] sm:$0xff]
    %v104 = vld [vmem:[%s1 + $0x58] sm:$0xff]
    %v105 = vld [vmem:[%s1 + $0x60] sm:$0xff]
    %v106 = vld [vmem:[%s1 + $0x68] sm:$0xff]
    %v107 = vld [vmem:[%s1 + $0x70] sm:$0xff]
    %v108 = vld [vmem:[%s1 + $0x78] sm:$0xff]
    %v109 = vmul.f32 %v93, %v93
    %v110 = vmul.f32 %v94, %v94
    %v111 = vmul.f32 %v95, %v95
    %v112 = vmul.f32 %v96, %v96
    %v113 = vmul.f32 %v97, %v97
    %v114 = vmul.f32 %v98, %v98
    %v115 = vmul.f32 %v99, %v99
    %v116 = vmul.f32 %v100, %v100
    %v117 = vmul.f32 %v101, %v101
    %v118 = vmul.f32 %v102, %v102
    %v119 = vmul.f32 %v103, %v103
    %v120 = vmul.f32 %v104, %v104
    %v121 = vmul.f32 %v105, %v105
    %v122 = vmul.f32 %v106, %v106
    %v123 = vmul.f32 %v107, %v107
    %v124 = vmul.f32 %v108, %v108
    %125 = vadd.xlane.f32.xlu0 %v109
    %v126 = vpop.xlane.xlu0 %125
    %127 = vadd.xlane.f32.xlu0 %v110
    %v128 = vpop.xlane.xlu0 %127
    %129 = vadd.xlane.f32.xlu0 %v111
    %v130 = vpop.xlane.xlu0 %129
    %131 = vadd.xlane.f32.xlu0 %v112
    %v132 = vpop.xlane.xlu0 %131
    %133 = vadd.xlane.f32.xlu0 %v113
    %v134 = vpop.xlane.xlu0 %133
    %135 = vadd.xlane.f32.xlu0 %v114
    %v136 = vpop.xlane.xlu0 %135
    %137 = vadd.xlane.f32.xlu0 %v115
    %v138 = vpop.xlane.xlu0 %137
    %139 = vadd.xlane.f32.xlu0 %v116
    %v140 = vpop.xlane.xlu0 %139
    %141 = vadd.xlane.f32.xlu0 %v117
    %v142 = vpop.xlane.xlu0 %141
    %143 = vadd.xlane.f32.xlu0 %v118
    %v144 = vpop.xlane.xlu0 %143
    %145 = vadd.xlane.f32.xlu0 %v119
    %v146 = vpop.xlane.xlu0 %145
    %147 = vadd.xlane.f32.xlu0 %v120
    %v148 = vpop.xlane.xlu0 %147
    %149 = vadd.xlane.f32.xlu0 %v121
    %v150 = vpop.xlane.xlu0 %149
    %151 = vadd.xlane.f32.xlu0 %v122
    %v152 = vpop.xlane.xlu0 %151
    %153 = vadd.xlane.f32.xlu0 %v123
    %v154 = vpop.xlane.xlu0 %153
    %155 = vadd.xlane.f32.xlu0 %v124
    %v156 = vpop.xlane.xlu0 %155
    %v157 = vmax.f32 %v126, 1e-24
    %v158 = vmax.f32 %v128, 1e-24
    %v159 = vmax.f32 %v130, 1e-24
    %v160 = vmax.f32 %v132, 1e-24
    %v161 = vmax.f32 %v134, 1e-24
    %v162 = vmax.f32 %v136, 1e-24
    %v163 = vmax.f32 %v138, 1e-24
    %v164 = vmax.f32 %v140, 1e-24
    %v165 = vmax.f32 %v142, 1e-24
    %v166 = vmax.f32 %v144, 1e-24
    %v167 = vmax.f32 %v146, 1e-24
    %v168 = vmax.f32 %v148, 1e-24
    %v169 = vmax.f32 %v150, 1e-24
    %v170 = vmax.f32 %v152, 1e-24
    %v171 = vmax.f32 %v154, 1e-24
    %v172 = vmax.f32 %v156, 1e-24
    %v173 = vrsqrt.pop %v157
    %v174 = vrsqrt.pop %v158
    %v175 = vrsqrt.pop %v159
    %v176 = vrsqrt.pop %v160
    %v177 = vrsqrt.pop %v161
    %v178 = vrsqrt.pop %v162
    %v179 = vrsqrt.pop %v163
    %v180 = vrsqrt.pop %v164
    %v181 = vrsqrt.pop %v165
    %v182 = vrsqrt.pop %v166
    %v183 = vrsqrt.pop %v167
    %v184 = vrsqrt.pop %v168
    %v185 = vrsqrt.pop %v169
    %v186 = vrsqrt.pop %v170
    %v187 = vrsqrt.pop %v171
    %v188 = vrsqrt.pop %v172
    %v189 = vmul.f32 %v93, %v173
    %v190 = vmul.f32 %v94, %v174
    %v191 = vmul.f32 %v95, %v175
    %v192 = vmul.f32 %v96, %v176
    %v193 = vmul.f32 %v97, %v177
    %v194 = vmul.f32 %v98, %v178
    %v195 = vmul.f32 %v99, %v179
    %v196 = vmul.f32 %v100, %v180
    %v197 = vmul.f32 %v101, %v181
    %v198 = vmul.f32 %v102, %v182
    %v199 = vmul.f32 %v103, %v183
    %v200 = vmul.f32 %v104, %v184
    %v201 = vmul.f32 %v105, %v185
    %v202 = vmul.f32 %v106, %v186
    %v203 = vmul.f32 %v107, %v187
    %v204 = vmul.f32 %v108, %v188
    %v205 = vpack.c.bf16 %v190, %v189
    %v206 = vpack.c.bf16 %v192, %v191
    %v207 = vpack.c.bf16 %v194, %v193
    %v208 = vpack.c.bf16 %v196, %v195
    %v209 = vpack.c.bf16 %v198, %v197
    %v210 = vpack.c.bf16 %v200, %v199
    %v211 = vpack.c.bf16 %v202, %v201
    %v212 = vpack.c.bf16 %v204, %v203
    %213 = vst [vmem:[#allocation2] sm:$0xff] %v205
    %214 = vst [vmem:[#allocation2 + $0x8] sm:$0xff] %v206
    %215 = vst [vmem:[#allocation2 + $0x10] sm:$0xff] %v207
    %216 = vst [vmem:[#allocation2 + $0x18] sm:$0xff] %v208
    %217 = vst [vmem:[#allocation2 + $0x20] sm:$0xff] %v209
    %218 = vst [vmem:[#allocation2 + $0x28] sm:$0xff] %v210
    %219 = vst [vmem:[#allocation2 + $0x30] sm:$0xff] %v211
    %220 = vst [vmem:[#allocation2 + $0x38] sm:$0xff] %v212
  $region17: #{memory_bank_forward.1} parent=0 // pred_fallthru
    _
  %v221 = vld [vmem:[%s0] sm:$0xff]
  %v222 = vld [vmem:[%s0 + $0x8] sm:$0xff]
  %v223 = vld [vmem:[%s0 + $0x10] sm:$0xff]
  %v224 = vld [vmem:[%s0 + $0x18] sm:$0xff]
  %v225 = vld [vmem:[%s0 + $0x20] sm:$0xff]
  %v226 = vld [vmem:[%s0 + $0x28] sm:$0xff]
  %v227 = vld [vmem:[%s0 + $0x30] sm:$0xff]
  %v228 = vld [vmem:[%s0 + $0x38] sm:$0xff]
  %v229 = vld [vmem:[%s0 + $0x40] sm:$0xff]
  %v230 = vld [vmem:[%s0 + $0x48] sm:$0xff]
  %v231 = vld [vmem:[%s0 + $0x50] sm:$0xff]
  %v232 = vld [vmem:[%s0 + $0x58] sm:$0xff]
  %v233 = vld [vmem:[%s0 + $0x60] sm:$0xff]
  %v234 = vld [vmem:[%s0 + $0x68] sm:$0xff]
  %v235 = vld [vmem:[%s0 + $0x70] sm:$0xff]
  %v236 = vld [vmem:[%s0 + $0x78] sm:$0xff]
  %v237 = vld [vmem:[#allocation2] sm:$0xff]
  %v238 = vld [vmem:[#allocation2 + $0x8] sm:$0xff]
  %v239 = vld [vmem:[#allocation2 + $0x10] sm:$0xff]
  %v240 = vld [vmem:[#allocation2 + $0x18] sm:$0xff]
  %v241 = vld [vmem:[#allocation2 + $0x20] sm:$0xff]
  %v242 = vld [vmem:[#allocation2 + $0x28] sm:$0xff]
  %v243 = vld [vmem:[#allocation2 + $0x30] sm:$0xff]
  %v244 = vld [vmem:[#allocation2 + $0x38] sm:$0xff]
  %v245 = vld [vmem:[%s36] sm:$0xff]
  %v246 = vld [vmem:[%s36 + $0x8] sm:$0xff]
  %v247 = vld [vmem:[%s36 + $0x10] sm:$0xff]
  %v248 = vld [vmem:[%s36 + $0x18] sm:$0xff]
  %v249 = vld [vmem:[%s36 + $0x20] sm:$0xff]
  %v250 = vld [vmem:[%s36 + $0x28] sm:$0xff]
  %v251 = vld [vmem:[%s36 + $0x30] sm:$0xff]
  %v252 = vld [vmem:[%s36 + $0x38] sm:$0xff]
  %v253 = vld [vmem:[%s36 + $0x40] sm:$0xff]
  %v254 = vld [vmem:[%s36 + $0x48] sm:$0xff]
  %v255 = vld [vmem:[%s36 + $0x50] sm:$0xff]
  %v256 = vld [vmem:[%s36 + $0x58] sm:$0xff]
  %v257 = vld [vmem:[%s36 + $0x60] sm:$0xff]
  %v258 = vld [vmem:[%s36 + $0x68] sm:$0xff]
  %v259 = vld [vmem:[%s36 + $0x70] sm:$0xff]
  %v260 = vld [vmem:[%s36 + $0x78] sm:$0xff]
  %v277 = vunpack.c.l.b16 %v245
  %v278 = vunpack.c.h.b16 %v245
  %v279 = vunpack.c.l.b16 %v246
  %v280 = vunpack.c.h.b16 %v246
  %v281 = vunpack.c.l.b16 %v247
  %v282 = vunpack.c.h.b16 %v247
  %v283 = vunpack.c.l.b16 %v248
  %v284 = vunpack.c.h.b16 %v248
  %v285 = vunpack.c.l.b16 %v249
  %v286 = vunpack.c.h.b16 %v249
  %v287 = vunpack.c.l.b16 %v250
  %v288 = vunpack.c.h.b16 %v250
  %v289 = vunpack.c.l.b16 %v251
  %v290 = vunpack.c.h.b16 %v251
  %v291 = vunpack.c.l.b16 %v252
  %v292 = vunpack.c.h.b16 %v252
  %v293 = vunpack.c.l.b16 %v253
  %v294 = vunpack.c.h.b16 %v253
  %v295 = vunpack.c.l.b16 %v254
  %v296 = vunpack.c.h.b16 %v254
  %v297 = vunpack.c.l.b16 %v255
  %v298 = vunpack.c.h.b16 %v255
  %v299 = vunpack.c.l.b16 %v256
  %v300 = vunpack.c.h.b16 %v256
  %v301 = vunpack.c.l.b16 %v257
  %v302 = vunpack.c.h.b16 %v257
  %v303 = vunpack.c.l.b16 %v258
  %v304 = vunpack.c.h.b16 %v258
  %v305 = vunpack.c.l.b16 %v259
  %v306 = vunpack.c.h.b16 %v259
  %v307 = vunpack.c.l.b16 %v260
  %v308 = vunpack.c.h.b16 %v260
  %v309 = vpack.c.b16 %v279, %v277
  %v310 = vpack.c.b16 %v280, %v278
  %v311 = vpack.c.b16 %v283, %v281
  %v312 = vpack.c.b16 %v284, %v282
  %v313 = vpack.c.b16 %v287, %v285
  %v314 = vpack.c.b16 %v288, %v286
  %v315 = vpack.c.b16 %v291, %v289
  %v316 = vpack.c.b16 %v292, %v290
  %v317 = vpack.c.b16 %v295, %v293
  %v318 = vpack.c.b16 %v296, %v294
  %v319 = vpack.c.b16 %v299, %v297
  %v320 = vpack.c.b16 %v300, %v298
  %v321 = vpack.c.b16 %v303, %v301
  %v322 = vpack.c.b16 %v304, %v302
  %v323 = vpack.c.b16 %v307, %v305
  %v324 = vpack.c.b16 %v308, %v306
  %341 = vmatprep.subr.bf16.mxu0 %v310
  %342 = vmatpush1.bf16.msra.mxu0 %v309
  %343 = vmatprep.subr.bf16.mxu0 %v312
  %344 = vmatpush1.bf16.msra.mxu0 %v311
  %345 = vmatprep.subr.bf16.mxu0 %v314
  %346 = vmatpush1.bf16.msra.mxu0 %v313
  %347 = vmatprep.subr.bf16.mxu0 %v316
  %348 = vmatpush1.bf16.msra.mxu0 %v315
  %349 = vmatprep.subr.bf16.mxu0 %v318
  %350 = vmatpush1.bf16.msra.mxu0 %v317
  %351 = vmatprep.subr.bf16.mxu0 %v320
  %352 = vmatpush1.bf16.msra.mxu0 %v319
  %353 = vmatprep.subr.bf16.mxu0 %v322
  %354 = vmatpush1.bf16.msra.mxu0 %v321
  %355 = vmatprep.subr.bf16.mxu0 %v324
  %356 = vmatpush1.bf16.msra.mxu0 %v323
  %357 = vmatprep.subr.bf16.mxu0 0
  %358 = vmatpush1.bf16.msra.mxu0 0
  %359 = vmatprep.subr.bf16.mxu0 0
  %360 = vmatpush1.bf16.msra.mxu0 0
  %361 = vmatprep.subr.bf16.mxu0 0
  %362 = vmatpush1.bf16.msra.mxu0 0
  %363 = vmatprep.subr.bf16.mxu0 0
  %364 = vmatpush1.bf16.msra.mxu0 0
  %365 = vmatprep.subr.bf16.mxu0 0
  %366 = vmatpush1.bf16.msra.mxu0 0
  %367 = vmatprep.subr.bf16.mxu0 0
  %368 = vmatpush1.bf16.msra.mxu0 0
  %369 = vmatprep.subr.bf16.mxu0 0
  %370 = vmatpush1.bf16.msra.mxu0 0
  %371 = vmatprep.subr.bf16.mxu0 0
  %372 = vmatpush1.bf16.msra.mxu0 0
  %373 = vmatprep.mubr.bf16.mxu0 0
  %374 = vmatmul.mubr.bf16.gmra.mrb[0].mxu0 %v237
  %v375 = vpop.f32.mrb[0].mxu0
  %v376 = vadd.f32 0.0, %v375
  %v377 = vpop.f32.mrb[0].mxu0
  %v378 = vadd.f32 0.0, %v377
  %v379 = vpop.f32.mrb[0].mxu0
  %v380 = vadd.f32 0.0, %v379
  %v381 = vpop.f32.mrb[0].mxu0
  %v382 = vadd.f32 0.0, %v381
  %383 = vmatprep.mubr.bf16.mxu0 0
  %384 = vmatmul.mubr.bf16.gmra.mrb[0].mxu0 %v238
  %v385 = vpop.f32.mrb[0].mxu0
  %v386 = vadd.f32 0.0, %v385
  %v387 = vpop.f32.mrb[0].mxu0
  %v388 = vadd.f32 0.0, %v387
  %v389 = vpop.f32.mrb[0].mxu0
  %v390 = vadd.f32 0.0, %v389
  %v391 = vpop.f32.mrb[0].mxu0
  %v392 = vadd.f32 0.0, %v391
  %393 = vmatprep.mubr.bf16.mxu0 0
  %394 = vmatmul.mubr.bf16.gmra.mrb[0].mxu0 %v239
  %v395 = vpop.f32.mrb[0].mxu0
  %v396 = vadd.f32 0.0, %v395
  %v397 = vpop.f32.mrb[0].mxu0
  %v398 = vadd.f32 0.0, %v397
  %v399 = vpop.f32.mrb[0].mxu0
  %v400 = vadd.f32 0.0, %v399
  %v401 = vpop.f32.mrb[0].mxu0
  %v402 = vadd.f32 0.0, %v401
  %403 = vmatprep.mubr.bf16.mxu0 0
  %404 = vmatmul.mubr.bf16.gmra.mrb[0].mxu0 %v240
  %v405 = vpop.f32.mrb[0].mxu0
  %v406 = vadd.f32 0.0, %v405
  %v407 = vpop.f32.mrb[0].mxu0
  %v408 = vadd.f32 0.0, %v407
  %v409 = vpop.f32.mrb[0].mxu0
  %v410 = vadd.f32 0.0, %v409
  %v411 = vpop.f32.mrb[0].mxu0
  %v412 = vadd.f32 0.0, %v411
  %413 = vmatprep.mubr.bf16.mxu0 0
  %414 = vmatmul.mubr.bf16.gmra.mrb[0].mxu0 %v241
  %v415 = vpop.f32.mrb[0].mxu0
  %v416 = vadd.f32 0.0, %v415
  %v417 = vpop.f32.mrb[0].mxu0
  %v418 = vadd.f32 0.0, %v417
  %v419 = vpop.f32.mrb[0].mxu0
  %v420 = vadd.f32 0.0, %v419
  %v421 = vpop.f32.mrb[0].mxu0
  %v422 = vadd.f32 0.0, %v421
  %423 = vmatprep.mubr.bf16.mxu0 0
  %424 = vmatmul.mubr.bf16.gmra.mrb[0].mxu0 %v242
  %v425 = vpop.f32.mrb[0].mxu0
  %v426 = vadd.f32 0.0, %v425
  %v427 = vpop.f32.mrb[0].mxu0
  %v428 = vadd.f32 0.0, %v427
  %v429 = vpop.f32.mrb[0].mxu0
  %v430 = vadd.f32 0.0, %v429
  %v431 = vpop.f32.mrb[0].mxu0
  %v432 = vadd.f32 0.0, %v431
  %433 = vmatprep.mubr.bf16.mxu0 0
  %434 = vmatmul.mubr.bf16.gmra.mrb[0].mxu0 %v243
  %v435 = vpop.f32.mrb[0].mxu0
  %v436 = vadd.f32 0.0, %v435
  %v437 = vpop.f32.mrb[0].mxu0
  %v438 = vadd.f32 0.0, %v437
  %v439 = vpop.f32.mrb[0].mxu0
  %v440 = vadd.f32 0.0, %v439
  %v441 = vpop.f32.mrb[0].mxu0
  %v442 = vadd.f32 0.0, %v441
  %443 = vmatprep.mubr.bf16.mxu0 0
  %444 = vmatmul.mubr.bf16.gmra.mrb[0].mxu0 %v244
  %v445 = vpop.f32.mrb[0].mxu0
  %v446 = vadd.f32 0.0, %v445
  %v447 = vpop.f32.mrb[0].mxu0
  %v448 = vadd.f32 0.0, %v447
  %v449 = vpop.f32.mrb[0].mxu0
  %v450 = vadd.f32 0.0, %v449
  %v451 = vpop.f32.mrb[0].mxu0
  %v452 = vadd.f32 0.0, %v451
  %453 = vdwg.mxu0
  %s454 = sadd.s32 0, 0
  %s455 = smul.u32 %s454, 256
  %v456 = vlaneseq
  %v457 = vand.u32 %v456, 127
  %v458 = vadd.s32 %v457, 128
  %v459 = vstv %s455
  %v460 = vadd.s32 %v459, %v457
  %v461 = vadd.s32 %v459, %v458
  %v462 = vmul.u32 %v221, 64
  %v463 = vmul.u32 %v222, 64
  %v464 = vmul.u32 %v223, 64
  %v465 = vmul.u32 %v224, 64
  %v466 = vmul.u32 %v225, 64
  %v467 = vmul.u32 %v226, 64
  %v468 = vmul.u32 %v227, 64
  %v469 = vmul.u32 %v228, 64
  %v470 = vmul.u32 %v229, 64
  %v471 = vmul.u32 %v230, 64
  %v472 = vmul.u32 %v231, 64
  %v473 = vmul.u32 %v232, 64
  %v474 = vmul.u32 %v233, 64
  %v475 = vmul.u32 %v234, 64
  %v476 = vmul.u32 %v235, 64
  %v477 = vmul.u32 %v236, 64
  %478 = vset.pattern.permute.xlu0 0
  %479 = vperm.xlu0 %478, %v462
  %v480 = vpop.permute.xlu0 %479
  %481 = vset.pattern.permute.xlu0 0
  %482 = vperm.xlu0 %481, %v463
  %v483 = vpop.permute.xlu0 %482
  %484 = vset.pattern.permute.xlu0 0
  %485 = vperm.xlu0 %484, %v464
  %v486 = vpop.permute.xlu0 %485
  %487 = vset.pattern.permute.xlu0 0
  %488 = vperm.xlu0 %487, %v465
  %v489 = vpop.permute.xlu0 %488
  %490 = vset.pattern.permute.xlu0 0
  %491 = vperm.xlu0 %490, %v466
  %v492 = vpop.permute.xlu0 %491
  %493 = vset.pattern.permute.xlu0 0
  %494 = vperm.xlu0 %493, %v467
  %v495 = vpop.permute.xlu0 %494
  %496 = vset.pattern.permute.xlu0 0
  %497 = vperm.xlu0 %496, %v468
  %v498 = vpop.permute.xlu0 %497
  %499 = vset.pattern.permute.xlu0 0
  %500 = vperm.xlu0 %499, %v469
  %v501 = vpop.permute.xlu0 %500
  %502 = vset.pattern.permute.xlu0 0
  %503 = vperm.xlu0 %502, %v470
  %v504 = vpop.permute.xlu0 %503
  %505 = vset.pattern.permute.xlu0 0
  %506 = vperm.xlu0 %505, %v471
  %v507 = vpop.permute.xlu0 %506
  %508 = vset.pattern.permute.xlu0 0
  %509 = vperm.xlu0 %508, %v472
  %v510 = vpop.permute.xlu0 %509
  %511 = vset.pattern.permute.xlu0 0
  %512 = vperm.xlu0 %511, %v473
  %v513 = vpop.permute.xlu0 %512
  %514 = vset.pattern.permute.xlu0 0
  %515 = vperm.xlu0 %514, %v474
  %v516 = vpop.permute.xlu0 %515
  %517 = vset.pattern.permute.xlu0 0
  %518 = vperm.xlu0 %517, %v475
  %v519 = vpop.permute.xlu0 %518
  %520 = vset.pattern.permute.xlu0 0
  %521 = vperm.xlu0 %520, %v476
  %v522 = vpop.permute.xlu0 %521
  %523 = vset.pattern.permute.xlu0 0
  %524 = vperm.xlu0 %523, %v477
  %v525 = vpop.permute.xlu0 %524
  %vm526 = vcmp.ge.s32.totalorder %v460, %v480
  %vm527 = vcmp.ge.s32.totalorder %v461, %v480
  %vm528 = vcmp.ge.s32.totalorder %v460, %v483
  %vm529 = vcmp.ge.s32.totalorder %v461, %v483
  %vm530 = vcmp.ge.s32.totalorder %v460, %v486
  %vm531 = vcmp.ge.s32.totalorder %v461, %v486
  %vm532 = vcmp.ge.s32.totalorder %v460, %v489
  %vm533 = vcmp.ge.s32.totalorder %v461, %v489
  %vm534 = vcmp.ge.s32.totalorder %v460, %v492
  %vm535 = vcmp.ge.s32.totalorder %v461, %v492
  %vm536 = vcmp.ge.s32.totalorder %v460, %v495
  %vm537 = vcmp.ge.s32.totalorder %v461, %v495
  %vm538 = vcmp.ge.s32.totalorder %v460, %v498
  %vm539 = vcmp.ge.s32.totalorder %v461, %v498
  %vm540 = vcmp.ge.s32.totalorder %v460, %v501
  %vm541 = vcmp.ge.s32.totalorder %v461, %v501
  %vm542 = vcmp.ge.s32.totalorder %v460, %v504
  %vm543 = vcmp.ge.s32.totalorder %v461, %v504
  %vm544 = vcmp.ge.s32.totalorder %v460, %v507
  %vm545 = vcmp.ge.s32.totalorder %v461, %v507
  %vm546 = vcmp.ge.s32.totalorder %v460, %v510
  %vm547 = vcmp.ge.s32.totalorder %v461, %v510
  %vm548 = vcmp.ge.s32.totalorder %v460, %v513
  %vm549 = vcmp.ge.s32.totalorder %v461, %v513
  %vm550 = vcmp.ge.s32.totalorder %v460, %v516
  %vm551 = vcmp.ge.s32.totalorder %v461, %v516
  %vm552 = vcmp.ge.s32.totalorder %v460, %v519
  %vm553 = vcmp.ge.s32.totalorder %v461, %v519
  %vm554 = vcmp.ge.s32.totalorder %v460, %v522
  %vm555 = vcmp.ge.s32.totalorder %v461, %v522
  %vm556 = vcmp.ge.s32.totalorder %v460, %v525
  %vm557 = vcmp.ge.s32.totalorder %v461, %v525
  %v558 = vadd.s32 %v462, 64
  %v559 = vadd.s32 %v463, 64
  %v560 = vadd.s32 %v464, 64
  %v561 = vadd.s32 %v465, 64
  %v562 = vadd.s32 %v466, 64
  %v563 = vadd.s32 %v467, 64
  %v564 = vadd.s32 %v468, 64
  %v565 = vadd.s32 %v469, 64
  %v566 = vadd.s32 %v470, 64
  %v567 = vadd.s32 %v471, 64
  %v568 = vadd.s32 %v472, 64
  %v569 = vadd.s32 %v473, 64
  %v570 = vadd.s32 %v474, 64
  %v571 = vadd.s32 %v475, 64
  %v572 = vadd.s32 %v476, 64
  %v573 = vadd.s32 %v477, 64
  %574 = vset.pattern.permute.xlu0 0
  %575 = vperm.xlu0 %574, %v558
  %v576 = vpop.permute.xlu0 %575
  %577 = vset.pattern.permute.xlu0 0
  %578 = vperm.xlu0 %577, %v559
  %v579 = vpop.permute.xlu0 %578
  %580 = vset.pattern.permute.xlu0 0
  %581 = vperm.xlu0 %580, %v560
  %v582 = vpop.permute.xlu0 %581
  %583 = vset.pattern.permute.xlu0 0
  %584 = vperm.xlu0 %583, %v561
  %v585 = vpop.permute.xlu0 %584
  %586 = vset.pattern.permute.xlu0 0
  %587 = vperm.xlu0 %586, %v562
  %v588 = vpop.permute.xlu0 %587
  %589 = vset.pattern.permute.xlu0 0
  %590 = vperm.xlu0 %589, %v563
  %v591 = vpop.permute.xlu0 %590
  %592 = vset.pattern.permute.xlu0 0
  %593 = vperm.xlu0 %592, %v564
  %v594 = vpop.permute.xlu0 %593
  %595 = vset.pattern.permute.xlu0 0
  %596 = vperm.xlu0 %595, %v565
  %v597 = vpop.permute.xlu0 %596
  %598 = vset.pattern.permute.xlu0 0
  %599 = vperm.xlu0 %598, %v566
  %v600 = vpop.permute.xlu0 %599
  %601 = vset.pattern.permute.xlu0 0
  %602 = vperm.xlu0 %601, %v567
  %v603 = vpop.permute.xlu0 %602
  %604 = vset.pattern.permute.xlu0 0
  %605 = vperm.xlu0 %604, %v568
  %v606 = vpop.permute.xlu0 %605
  %607 = vset.pattern.permute.xlu0 0
  %608 = vperm.xlu0 %607, %v569
  %v609 = vpop.permute.xlu0 %608
  %610 = vset.pattern.permute.xlu0 0
  %611 = vperm.xlu0 %610, %v570
  %v612 = vpop.permute.xlu0 %611
  %613 = vset.pattern.permute.xlu0 0
  %614 = vperm.xlu0 %613, %v571
  %v615 = vpop.permute.xlu0 %614
  %616 = vset.pattern.permute.xlu0 0
  %617 = vperm.xlu0 %616, %v572
  %v618 = vpop.permute.xlu0 %617
  %619 = vset.pattern.permute.xlu0 0
  %620 = vperm.xlu0 %619, %v573
  %v621 = vpop.permute.xlu0 %620
  %vm622 = vcmp.lt.s32.totalorder %v460, %v576
  %vm623 = vcmp.lt.s32.totalorder %v461, %v576
  %vm624 = vcmp.lt.s32.totalorder %v460, %v579
  %vm625 = vcmp.lt.s32.totalorder %v461, %v579
  %vm626 = vcmp.lt.s32.totalorder %v460, %v582
  %vm627 = vcmp.lt.s32.totalorder %v461, %v582
  %vm628 = vcmp.lt.s32.totalorder %v460, %v585
  %vm629 = vcmp.lt.s32.totalorder %v461, %v585
  %vm630 = vcmp.lt.s32.totalorder %v460, %v588
  %vm631 = vcmp.lt.s32.totalorder %v461, %v588
  %vm632 = vcmp.lt.s32.totalorder %v460, %v591
  %vm633 = vcmp.lt.s32.totalorder %v461, %v591
  %vm634 = vcmp.lt.s32.totalorder %v460, %v594
  %vm635 = vcmp.lt.s32.totalorder %v461, %v594
  %vm636 = vcmp.lt.s32.totalorder %v460, %v597
  %vm637 = vcmp.lt.s32.totalorder %v461, %v597
  %vm638 = vcmp.lt.s32.totalorder %v460, %v600
  %vm639 = vcmp.lt.s32.totalorder %v461, %v600
  %vm640 = vcmp.lt.s32.totalorder %v460, %v603
  %vm641 = vcmp.lt.s32.totalorder %v461, %v603
  %vm642 = vcmp.lt.s32.totalorder %v460, %v606
  %vm643 = vcmp.lt.s32.totalorder %v461, %v606
  %vm644 = vcmp.lt.s32.totalorder %v460, %v609
  %vm645 = vcmp.lt.s32.totalorder %v461, %v609
  %vm646 = vcmp.lt.s32.totalorder %v460, %v612
  %vm647 = vcmp.lt.s32.totalorder %v461, %v612
  %vm648 = vcmp.lt.s32.totalorder %v460, %v615
  %vm649 = vcmp.lt.s32.totalorder %v461, %v615
  %vm650 = vcmp.lt.s32.totalorder %v460, %v618
  %vm651 = vcmp.lt.s32.totalorder %v461, %v618
  %vm652 = vcmp.lt.s32.totalorder %v460, %v621
  %vm653 = vcmp.lt.s32.totalorder %v461, %v621
  %vm654 = vmand %vm526, %vm622
  %vm655 = vmand %vm527, %vm623
  %vm656 = vmand %vm528, %vm624
  %vm657 = vmand %vm529, %vm625
  %vm658 = vmand %vm530, %vm626
  %vm659 = vmand %vm531, %vm627
  %vm660 = vmand %vm532, %vm628
  %vm661 = vmand %vm533, %vm629
  %vm662 = vmand %vm534, %vm630
  %vm663 = vmand %vm535, %vm631
  %vm664 = vmand %vm536, %vm632
  %vm665 = vmand %vm537, %vm633
  %vm666 = vmand %vm538, %vm634
  %vm667 = vmand %vm539, %vm635
  %vm668 = vmand %vm540, %vm636
  %vm669 = vmand %vm541, %vm637
  %vm670 = vmand %vm542, %vm638
  %vm671 = vmand %vm543, %vm639
  %vm672 = vmand %vm544, %vm640
  %vm673 = vmand %vm545, %vm641
  %vm674 = vmand %vm546, %vm642
  %vm675 = vmand %vm547, %vm643
  %vm676 = vmand %vm548, %vm644
  %vm677 = vmand %vm549, %vm645
  %vm678 = vmand %vm550, %vm646
  %vm679 = vmand %vm551, %vm647
  %vm680 = vmand %vm552, %vm648
  %vm681 = vmand %vm553, %vm649
  %vm682 = vmand %vm554, %vm650
  %vm683 = vmand %vm555, %vm651
  %vm684 = vmand %vm556, %vm652
  %vm685 = vmand %vm557, %vm653
  %v686 = vld [vmem:[#allocation5] sm:$0xff]
  %v687 = vld [vmem:[#allocation5 + $0x8] sm:$0xff]
  %v688 = vld [vmem:[#allocation5 + $0x10] sm:$0xff]
  %v689 = vld [vmem:[#allocation5 + $0x18] sm:$0xff]
  %v690 = vld [vmem:[#allocation5 + $0x20] sm:$0xff]
  %v691 = vld [vmem:[#allocation5 + $0x28] sm:$0xff]
  %v692 = vld [vmem:[#allocation5 + $0x30] sm:$0xff]
  %v693 = vld [vmem:[#allocation5 + $0x38] sm:$0xff]
  %v694 = vld [vmem:[#allocation5 + $0x40] sm:$0xff]
  %v695 = vld [vmem:[#allocation5 + $0x48] sm:$0xff]
  %v696 = vld [vmem:[#allocation5 + $0x50] sm:$0xff]
  %v697 = vld [vmem:[#allocation5 + $0x58] sm:$0xff]
  %v698 = vld [vmem:[#allocation5 + $0x60] sm:$0xff]
  %v699 = vld [vmem:[#allocation5 + $0x68] sm:$0xff]
  %v700 = vld [vmem:[#allocation5 + $0x70] sm:$0xff]
  %v701 = vld [vmem:[#allocation5 + $0x78] sm:$0xff]
  %v702 = vsel %vm654, %v376, 0.0
  %v703 = vsel %vm655, %v378, 0.0
  %v704 = vsel %vm656, %v380, 0.0
  %v705 = vsel %vm657, %v382, 0.0
  %v706 = vsel %vm658, %v386, 0.0
  %v707 = vsel %vm659, %v388, 0.0
  %v708 = vsel %vm660, %v390, 0.0
  %v709 = vsel %vm661, %v392, 0.0
  %v710 = vsel %vm662, %v396, 0.0
  %v711 = vsel %vm663, %v398, 0.0
  %v712 = vsel %vm664, %v400, 0.0
  %v713 = vsel %vm665, %v402, 0.0
  %v714 = vsel %vm666, %v406, 0.0
  %v715 = vsel %vm667, %v408, 0.0
  %v716 = vsel %vm668, %v410, 0.0
  %v717 = vsel %vm669, %v412, 0.0
  %v718 = vsel %vm670, %v416, 0.0
  %v719 = vsel %vm671, %v418, 0.0
  %v720 = vsel %vm672, %v420, 0.0
  %v721 = vsel %vm673, %v422, 0.0
  %v722 = vsel %vm674, %v426, 0.0
  %v723 = vsel %vm675, %v428, 0.0
  %v724 = vsel %vm676, %v430, 0.0
  %v725 = vsel %vm677, %v432, 0.0
  %v726 = vsel %vm678, %v436, 0.0
  %v727 = vsel %vm679, %v438, 0.0
  %v728 = vsel %vm680, %v440, 0.0
  %v729 = vsel %vm681, %v442, 0.0
  %v730 = vsel %vm682, %v446, 0.0
  %v731 = vsel %vm683, %v448, 0.0
  %v732 = vsel %vm684, %v450, 0.0
  %v733 = vsel %vm685, %v452, 0.0
  %v734 = vadd.f32 %v702, %v703
  %735 = vadd.xlane.f32.xlu0 %v734
  %v736 = vpop.xlane.xlu0 %735
  %v737 = vadd.f32 %v704, %v705
  %738 = vadd.xlane.f32.xlu0 %v737
  %v739 = vpop.xlane.xlu0 %738
  %v740 = vadd.f32 %v706, %v707
  %741 = vadd.xlane.f32.xlu0 %v740
  %v742 = vpop.xlane.xlu0 %741
  %v743 = vadd.f32 %v708, %v709
  %744 = vadd.xlane.f32.xlu0 %v743
  %v745 = vpop.xlane.xlu0 %744
  %v746 = vadd.f32 %v710, %v711
  %747 = vadd.xlane.f32.xlu0 %v746
  %v748 = vpop.xlane.xlu0 %747
  %v749 = vadd.f32 %v712, %v713
  %750 = vadd.xlane.f32.xlu0 %v749
  %v751 = vpop.xlane.xlu0 %750
  %v752 = vadd.f32 %v714, %v715
  %753 = vadd.xlane.f32.xlu0 %v752
  %v754 = vpop.xlane.xlu0 %753
  %v755 = vadd.f32 %v716, %v717
  %756 = vadd.xlane.f32.xlu0 %v755
  %v757 = vpop.xlane.xlu0 %756
  %v758 = vadd.f32 %v718, %v719
  %759 = vadd.xlane.f32.xlu0 %v758
  %v760 = vpop.xlane.xlu0 %759
  %v761 = vadd.f32 %v720, %v721
  %762 = vadd.xlane.f32.xlu0 %v761
  %v763 = vpop.xlane.xlu0 %762
  %v764 = vadd.f32 %v722, %v723
  %765 = vadd.xlane.f32.xlu0 %v764
  %v766 = vpop.xlane.xlu0 %765
  %v767 = vadd.f32 %v724, %v725
  %768 = vadd.xlane.f32.xlu0 %v767
  %v769 = vpop.xlane.xlu0 %768
  %v770 = vadd.f32 %v726, %v727
  %771 = vadd.xlane.f32.xlu0 %v770
  %v772 = vpop.xlane.xlu0 %771
  %v773 = vadd.f32 %v728, %v729
  %774 = vadd.xlane.f32.xlu0 %v773
  %v775 = vpop.xlane.xlu0 %774
  %v776 = vadd.f32 %v730, %v731
  %777 = vadd.xlane.f32.xlu0 %v776
  %v778 = vpop.xlane.xlu0 %777
  %v779 = vadd.f32 %v732, %v733
  %780 = vadd.xlane.f32.xlu0 %v779
  %v781 = vpop.xlane.xlu0 %780
  %v782 = vadd.f32 %v686, %v736
  %v783 = vadd.f32 %v687, %v739
  %v784 = vadd.f32 %v688, %v742
  %v785 = vadd.f32 %v689, %v745
  %v786 = vadd.f32 %v690, %v748
  %v787 = vadd.f32 %v691, %v751
  %v788 = vadd.f32 %v692, %v754
  %v789 = vadd.f32 %v693, %v757
  %v790 = vadd.f32 %v694, %v760
  %v791 = vadd.f32 %v695, %v763
  %v792 = vadd.f32 %v696, %v766
  %v793 = vadd.f32 %v697, %v769
  %v794 = vadd.f32 %v698, %v772
  %v795 = vadd.f32 %v699, %v775
  %v796 = vadd.f32 %v700, %v778
  %v797 = vadd.f32 %v701, %v781
  %vm798 = vcmask 7168
  %799 = vst.msk [vmem:[#allocation5] sm:$0xff] %vm798, %v782
  %800 = vst.msk [vmem:[#allocation5 + $0x8] sm:$0xff] %vm798, %v783
  %801 = vst.msk [vmem:[#allocation5 + $0x10] sm:$0xff] %vm798, %v784
  %802 = vst.msk [vmem:[#allocation5 + $0x18] sm:$0xff] %vm798, %v785
  %803 = vst.msk [vmem:[#allocation5 + $0x20] sm:$0xff] %vm798, %v786
  %804 = vst.msk [vmem:[#allocation5 + $0x28] sm:$0xff] %vm798, %v787
  %805 = vst.msk [vmem:[#allocation5 + $0x30] sm:$0xff] %vm798, %v788
  %806 = vst.msk [vmem:[#allocation5 + $0x38] sm:$0xff] %vm798, %v789
  %807 = vst.msk [vmem:[#allocation5 + $0x40] sm:$0xff] %vm798, %v790
  %808 = vst.msk [vmem:[#allocation5 + $0x48] sm:$0xff] %vm798, %v791
  %809 = vst.msk [vmem:[#allocation5 + $0x50] sm:$0xff] %vm798, %v792
  %810 = vst.msk [vmem:[#allocation5 + $0x58] sm:$0xff] %vm798, %v793
  %811 = vst.msk [vmem:[#allocation5 + $0x60] sm:$0xff] %vm798, %v794
  %812 = vst.msk [vmem:[#allocation5 + $0x68] sm:$0xff] %vm798, %v795
  %813 = vst.msk [vmem:[#allocation5 + $0x70] sm:$0xff] %vm798, %v796
  %814 = vst.msk [vmem:[#allocation5 + $0x78] sm:$0xff] %vm798, %v797
  %v815 = vand.u32 %v460, 3
  %v816 = vand.u32 %v461, 3
  %817 = vset.pattern.permute.xlu0 0
  %818 = vperm.xlu0 %817, %v221
  %v819 = vpop.permute.xlu0 %818
  %820 = vset.pattern.permute.xlu0 0
  %821 = vperm.xlu0 %820, %v222
  %v822 = vpop.permute.xlu0 %821
  %823 = vset.pattern.permute.xlu0 0
  %824 = vperm.xlu0 %823, %v223
  %v825 = vpop.permute.xlu0 %824
  %826 = vset.pattern.permute.xlu0 0
  %827 = vperm.xlu0 %826, %v224
  %v828 = vpop.permute.xlu0 %827
  %829 = vset.pattern.permute.xlu0 0
  %830 = vperm.xlu0 %829, %v225
  %v831 = vpop.permute.xlu0 %830
  %832 = vset.pattern.permute.xlu0 0
  %833 = vperm.xlu0 %832, %v226
  %v834 = vpop.permute.xlu0 %833
  %835 = vset.pattern.permute.xlu0 0
  %836 = vperm.xlu0 %835, %v227
  %v837 = vpop.permute.xlu0 %836
  %838 = vset.pattern.permute.xlu0 0
  %839 = vperm.xlu0 %838, %v228
  %v840 = vpop.permute.xlu0 %839
  %841 = vset.pattern.permute.xlu0 0
  %842 = vperm.xlu0 %841, %v229
  %v843 = vpop.permute.xlu0 %842
  %844 = vset.pattern.permute.xlu0 0
  %845 = vperm.xlu0 %844, %v230
  %v846 = vpop.permute.xlu0 %845
  %847 = vset.pattern.permute.xlu0 0
  %848 = vperm.xlu0 %847, %v231
  %v849 = vpop.permute.xlu0 %848
  %850 = vset.pattern.permute.xlu0 0
  %851 = vperm.xlu0 %850, %v232
  %v852 = vpop.permute.xlu0 %851
  %853 = vset.pattern.permute.xlu0 0
  %854 = vperm.xlu0 %853, %v233
  %v855 = vpop.permute.xlu0 %854
  %856 = vset.pattern.permute.xlu0 0
  %857 = vperm.xlu0 %856, %v234
  %v858 = vpop.permute.xlu0 %857
  %859 = vset.pattern.permute.xlu0 0
  %860 = vperm.xlu0 %859, %v235
  %v861 = vpop.permute.xlu0 %860
  %862 = vset.pattern.permute.xlu0 0
  %863 = vperm.xlu0 %862, %v236
  %v864 = vpop.permute.xlu0 %863
  %vm865 = vcmp.ne.s32.totalorder %v815, %v819
  %vm866 = vcmp.ne.s32.totalorder %v816, %v819
  %vm867 = vcmp.ne.s32.totalorder %v815, %v822
  %vm868 = vcmp.ne.s32.totalorder %v816, %v822
  %vm869 = vcmp.ne.s32.totalorder %v815, %v825
  %vm870 = vcmp.ne.s32.totalorder %v816, %v825
  %vm871 = vcmp.ne.s32.totalorder %v815, %v828
  %vm872 = vcmp.ne.s32.totalorder %v816, %v828
  %vm873 = vcmp.ne.s32.totalorder %v815, %v831
  %vm874 = vcmp.ne.s32.totalorder %v816, %v831
  %vm875 = vcmp.ne.s32.totalorder %v815, %v834
  %vm876 = vcmp.ne.s32.totalorder %v816, %v834
  %vm877 = vcmp.ne.s32.totalorder %v815, %v837
  %vm878 = vcmp.ne.s32.totalorder %v816, %v837
  %vm879 = vcmp.ne.s32.totalorder %v815, %v840
  %vm880 = vcmp.ne.s32.totalorder %v816, %v840
  %vm881 = vcmp.ne.s32.totalorder %v815, %v843
  %vm882 = vcmp.ne.s32.totalorder %v816, %v843
  %vm883 = vcmp.ne.s32.totalorder %v815, %v846
  %vm884 = vcmp.ne.s32.totalorder %v816, %v846
  %vm885 = vcmp.ne.s32.totalorder %v815, %v849
  %vm886 = vcmp.ne.s32.totalorder %v816, %v849
  %vm887 = vcmp.ne.s32.totalorder %v815, %v852
  %vm888 = vcmp.ne.s32.totalorder %v816, %v852
  %vm889 = vcmp.ne.s32.totalorder %v815, %v855
  %vm890 = vcmp.ne.s32.totalorder %v816, %v855
  %vm891 = vcmp.ne.s32.totalorder %v815, %v858
  %vm892 = vcmp.ne.s32.totalorder %v816, %v858
  %vm893 = vcmp.ne.s32.totalorder %v815, %v861
  %vm894 = vcmp.ne.s32.totalorder %v816, %v861
  %vm895 = vcmp.ne.s32.totalorder %v815, %v864
  %vm896 = vcmp.ne.s32.totalorder %v816, %v864
  %v897 = vsel %vm865, %v376, -1e+30
  %v898 = vsel %vm866, %v378, -1e+30
  %v899 = vsel %vm867, %v380, -1e+30
  %v900 = vsel %vm868, %v382, -1e+30
  %v901 = vsel %vm869, %v386, -1e+30
  %v902 = vsel %vm870, %v388, -1e+30
  %v903 = vsel %vm871, %v390, -1e+30
  %v904 = vsel %vm872, %v392, -1e+30
  %v905 = vsel %vm873, %v396, -1e+30
  %v906 = vsel %vm874, %v398, -1e+30
  %v907 = vsel %vm875, %v400, -1e+30
  %v908 = vsel %vm876, %v402, -1e+30
  %v909 = vsel %vm877, %v406, -1e+30
  %v910 = vsel %vm878, %v408, -1e+30
  %v911 = vsel %vm879, %v410, -1e+30
  %v912 = vsel %vm880, %v412, -1e+30
  %v913 = vsel %vm881, %v416, -1e+30
  %v914 = vsel %vm882, %v418, -1e+30
  %v915 = vsel %vm883, %v420, -1e+30
  %v916 = vsel %vm884, %v422, -1e+30
  %v917 = vsel %vm885, %v426, -1e+30
  %v918 = vsel %vm886, %v428, -1e+30
  %v919 = vsel %vm887, %v430, -1e+30
  %v920 = vsel %vm888, %v432, -1e+30
  %v921 = vsel %vm889, %v436, -1e+30
  %v922 = vsel %vm890, %v438, -1e+30
  %v923 = vsel %vm891, %v440, -1e+30
  %v924 = vsel %vm892, %v442, -1e+30
  %v925 = vsel %vm893, %v446, -1e+30
  %v926 = vsel %vm894, %v448, -1e+30
  %v927 = vsel %vm895, %v450, -1e+30
  %v928 = vsel %vm896, %v452, -1e+30
  %v929 = vld [vmem:[#allocation3] sm:$0xff]
  %v930 = vld [vmem:[#allocation3 + $0x8] sm:$0xff]
  %v931 = vld [vmem:[#allocation3 + $0x10] sm:$0xff]
  %v932 = vld [vmem:[#allocation3 + $0x18] sm:$0xff]
  %v933 = vld [vmem:[#allocation3 + $0x20] sm:$0xff]
  %v934 = vld [vmem:[#allocation3 + $0x28] sm:$0xff]
  %v935 = vld [vmem:[#allocation3 + $0x30] sm:$0xff]
  %v936 = vld [vmem:[#allocation3 + $0x38] sm:$0xff]
  %v937 = vld [vmem:[#allocation3 + $0x40] sm:$0xff]
  %v938 = vld [vmem:[#allocation3 + $0x48] sm:$0xff]
  %v939 = vld [vmem:[#allocation3 + $0x50] sm:$0xff]
  %v940 = vld [vmem:[#allocation3 + $0x58] sm:$0xff]
  %v941 = vld [vmem:[#allocation3 + $0x60] sm:$0xff]
  %v942 = vld [vmem:[#allocation3 + $0x68] sm:$0xff]
  %v943 = vld [vmem:[#allocation3 + $0x70] sm:$0xff]
  %v944 = vld [vmem:[#allocation3 + $0x78] sm:$0xff]
  %v945 = vmax.f32 %v897, %v898
  %946 = vmax.xlane.f32.xlu0 %v945
  %v947 = vpop.xlane.xlu0 %946
  %v948 = vmax.f32 %v899, %v900
  %949 = vmax.xlane.f32.xlu0 %v948
  %v950 = vpop.xlane.xlu0 %949
  %v951 = vmax.f32 %v901, %v902
  %952 = vmax.xlane.f32.xlu0 %v951
  %v953 = vpop.xlane.xlu0 %952
  %v954 = vmax.f32 %v903, %v904
  %955 = vmax.xlane.f32.xlu0 %v954
  %v956 = vpop.xlane.xlu0 %955
  %v957 = vmax.f32 %v905, %v906
  %958 = vmax.xlane.f32.xlu0 %v957
  %v959 = vpop.xlane.xlu0 %958
  %v960 = vmax.f32 %v907, %v908
  %961 = vmax.xlane.f32.xlu0 %v960
  %v962 = vpop.xlane.xlu0 %961
  %v963 = vmax.f32 %v909, %v910
  %964 = vmax.xlane.f32.xlu0 %v963
  %v965 = vpop.xlane.xlu0 %964
  %v966 = vmax.f32 %v911, %v912
  %967 = vmax.xlane.f32.xlu0 %v966
  %v968 = vpop.xlane.xlu0 %967
  %v969 = vmax.f32 %v913, %v914
  %970 = vmax.xlane.f32.xlu0 %v969
  %v971 = vpop.xlane.xlu0 %970
  %v972 = vmax.f32 %v915, %v916
  %973 = vmax.xlane.f32.xlu0 %v972
  %v974 = vpop.xlane.xlu0 %973
  %v975 = vmax.f32 %v917, %v918
  %976 = vmax.xlane.f32.xlu0 %v975
  %v977 = vpop.xlane.xlu0 %976
  %v978 = vmax.f32 %v919, %v920
  %979 = vmax.xlane.f32.xlu0 %v978
  %v980 = vpop.xlane.xlu0 %979
  %v981 = vmax.f32 %v921, %v922
  %982 = vmax.xlane.f32.xlu0 %v981
  %v983 = vpop.xlane.xlu0 %982
  %v984 = vmax.f32 %v923, %v924
  %985 = vmax.xlane.f32.xlu0 %v984
  %v986 = vpop.xlane.xlu0 %985
  %v987 = vmax.f32 %v925, %v926
  %988 = vmax.xlane.f32.xlu0 %v987
  %v989 = vpop.xlane.xlu0 %988
  %v990 = vmax.f32 %v927, %v928
  %991 = vmax.xlane.f32.xlu0 %v990
  %v992 = vpop.xlane.xlu0 %991
  %v993 = vmax.f32 %v929, %v947
  %v994 = vmax.f32 %v930, %v950
  %v995 = vmax.f32 %v931, %v953
  %v996 = vmax.f32 %v932, %v956
  %v997 = vmax.f32 %v933, %v959
  %v998 = vmax.f32 %v934, %v962
  %v999 = vmax.f32 %v935, %v965
  %v1000 = vmax.f32 %v936, %v968
  %v1001 = vmax.f32 %v937, %v971
  %v1002 = vmax.f32 %v938, %v974
  %v1003 = vmax.f32 %v939, %v977
  %v1004 = vmax.f32 %v940, %v980
  %v1005 = vmax.f32 %v941, %v983
  %v1006 = vmax.f32 %v942, %v986
  %v1007 = vmax.f32 %v943, %v989
  %v1008 = vmax.f32 %v944, %v992
  %v1009 = vld [vmem:[#allocation4] sm:$0xff]
  %v1010 = vld [vmem:[#allocation4 + $0x8] sm:$0xff]
  %v1011 = vld [vmem:[#allocation4 + $0x10] sm:$0xff]
  %v1012 = vld [vmem:[#allocation4 + $0x18] sm:$0xff]
  %v1013 = vld [vmem:[#allocation4 + $0x20] sm:$0xff]
  %v1014 = vld [vmem:[#allocation4 + $0x28] sm:$0xff]
  %v1015 = vld [vmem:[#allocation4 + $0x30] sm:$0xff]
  %v1016 = vld [vmem:[#allocation4 + $0x38] sm:$0xff]
  %v1017 = vld [vmem:[#allocation4 + $0x40] sm:$0xff]
  %v1018 = vld [vmem:[#allocation4 + $0x48] sm:$0xff]
  %v1019 = vld [vmem:[#allocation4 + $0x50] sm:$0xff]
  %v1020 = vld [vmem:[#allocation4 + $0x58] sm:$0xff]
  %v1021 = vld [vmem:[#allocation4 + $0x60] sm:$0xff]
  %v1022 = vld [vmem:[#allocation4 + $0x68] sm:$0xff]
  %v1023 = vld [vmem:[#allocation4 + $0x70] sm:$0xff]
  %v1024 = vld [vmem:[#allocation4 + $0x78] sm:$0xff]
  %v1025 = vsub.f32 %v929, %v993
  %v1026 = vsub.f32 %v930, %v994
  %v1027 = vsub.f32 %v931, %v995
  %v1028 = vsub.f32 %v932, %v996
  %v1029 = vsub.f32 %v933, %v997
  %v1030 = vsub.f32 %v934, %v998
  %v1031 = vsub.f32 %v935, %v999
  %v1032 = vsub.f32 %v936, %v1000
  %v1033 = vsub.f32 %v937, %v1001
  %v1034 = vsub.f32 %v938, %v1002
  %v1035 = vsub.f32 %v939, %v1003
  %v1036 = vsub.f32 %v940, %v1004
  %v1037 = vsub.f32 %v941, %v1005
  %v1038 = vsub.f32 %v942, %v1006
  %v1039 = vsub.f32 %v943, %v1007
  %v1040 = vsub.f32 %v944, %v1008
  %v1041 = vmul.f32 %v1025, 1.442695
  %v1042 = vpow.pop %v1041
  %v1043 = vmul.f32 %v1026, 1.442695
  %v1044 = vpow.pop %v1043
  %v1045 = vmul.f32 %v1027, 1.442695
  %v1046 = vpow.pop %v1045
  %v1047 = vmul.f32 %v1028, 1.442695
  %v1048 = vpow.pop %v1047
  %v1049 = vmul.f32 %v1029, 1.442695
  %v1050 = vpow.pop %v1049
  %v1051 = vmul.f32 %v1030, 1.442695
  %v1052 = vpow.pop %v1051
  %v1053 = vmul.f32 %v1031, 1.442695
  %v1054 = vpow.pop %v1053
  %v1055 = vmul.f32 %v1032, 1.442695
  %v1056 = vpow.pop %v1055
  %v1057 = vmul.f32 %v1033, 1.442695
  %v1058 = vpow.pop %v1057
  %v1059 = vmul.f32 %v1034, 1.442695
  %v1060 = vpow.pop %v1059
  %v1061 = vmul.f32 %v1035, 1.442695
  %v1062 = vpow.pop %v1061
  %v1063 = vmul.f32 %v1036, 1.442695
  %v1064 = vpow.pop %v1063
  %v1065 = vmul.f32 %v1037, 1.442695
  %v1066 = vpow.pop %v1065
  %v1067 = vmul.f32 %v1038, 1.442695
  %v1068 = vpow.pop %v1067
  %v1069 = vmul.f32 %v1039, 1.442695
  %v1070 = vpow.pop %v1069
  %v1071 = vmul.f32 %v1040, 1.442695
  %v1072 = vpow.pop %v1071
  %v1073 = vmul.f32 %v1009, %v1042
  %v1074 = vmul.f32 %v1010, %v1044
  %v1075 = vmul.f32 %v1011, %v1046
  %v1076 = vmul.f32 %v1012, %v1048
  %v1077 = vmul.f32 %v1013, %v1050
  %v1078 = vmul.f32 %v1014, %v1052
  %v1079 = vmul.f32 %v1015, %v1054
  %v1080 = vmul.f32 %v1016, %v1056
  %v1081 = vmul.f32 %v1017, %v1058
  %v1082 = vmul.f32 %v1018, %v1060
  %v1083 = vmul.f32 %v1019, %v1062
  %v1084 = vmul.f32 %v1020, %v1064
  %v1085 = vmul.f32 %v1021, %v1066
  %v1086 = vmul.f32 %v1022, %v1068
  %v1087 = vmul.f32 %v1023, %v1070
  %v1088 = vmul.f32 %v1024, %v1072
  %1090 = vset.pattern.permute.xlu0 0
  %1091 = vperm.xlu0 %1090, %v993
  %v1092 = vpop.permute.xlu0 %1091
  %1095 = vset.pattern.permute.xlu0 0
  %1096 = vperm.xlu0 %1095, %v994
  %v1097 = vpop.permute.xlu0 %1096
  %1100 = vset.pattern.permute.xlu0 0
  %1101 = vperm.xlu0 %1100, %v995
  %v1102 = vpop.permute.xlu0 %1101
  %1105 = vset.pattern.permute.xlu0 0
  %1106 = vperm.xlu0 %1105, %v996
  %v1107 = vpop.permute.xlu0 %1106
  %1110 = vset.pattern.permute.xlu0 0
  %1111 = vperm.xlu0 %1110, %v997
  %v1112 = vpop.permute.xlu0 %1111
  %1115 = vset.pattern.permute.xlu0 0
  %1116 = vperm.xlu0 %1115, %v998
  %v1117 = vpop.permute.xlu0 %1116
  %1120 = vset.pattern.permute.xlu0 0
  %1121 = vperm.xlu0 %1120, %v999
  %v1122 = vpop.permute.xlu0 %1121
  %1125 = vset.pattern.permute.xlu0 0
  %1126 = vperm.xlu0 %1125, %v1000
  %v1127 = vpop.permute.xlu0 %1126
  %1130 = vset.pattern.permute.xlu0 0
  %1131 = vperm.xlu0 %1130, %v1001
  %v1132 = vpop.permute.xlu0 %1131
  %1135 = vset.pattern.permute.xlu0 0
  %1136 = vperm.xlu0 %1135, %v1002
  %v1137 = vpop.permute.xlu0 %1136
  %1140 = vset.pattern.permute.xlu0 0
  %1141 = vperm.xlu0 %1140, %v1003
  %v1142 = vpop.permute.xlu0 %1141
  %1145 = vset.pattern.permute.xlu0 0
  %1146 = vperm.xlu0 %1145, %v1004
  %v1147 = vpop.permute.xlu0 %1146
  %1150 = vset.pattern.permute.xlu0 0
  %1151 = vperm.xlu0 %1150, %v1005
  %v1152 = vpop.permute.xlu0 %1151
  %1155 = vset.pattern.permute.xlu0 0
  %1156 = vperm.xlu0 %1155, %v1006
  %v1157 = vpop.permute.xlu0 %1156
  %1160 = vset.pattern.permute.xlu0 0
  %1161 = vperm.xlu0 %1160, %v1007
  %v1162 = vpop.permute.xlu0 %1161
  %1165 = vset.pattern.permute.xlu0 0
  %1166 = vperm.xlu0 %1165, %v1008
  %v1167 = vpop.permute.xlu0 %1166
  %v1169 = vsub.f32 %v376, %v1092
  %v1170 = vsub.f32 %v378, %v1092
  %v1171 = vsub.f32 %v380, %v1097
  %v1172 = vsub.f32 %v382, %v1097
  %v1173 = vsub.f32 %v386, %v1102
  %v1174 = vsub.f32 %v388, %v1102
  %v1175 = vsub.f32 %v390, %v1107
  %v1176 = vsub.f32 %v392, %v1107
  %v1177 = vsub.f32 %v396, %v1112
  %v1178 = vsub.f32 %v398, %v1112
  %v1179 = vsub.f32 %v400, %v1117
  %v1180 = vsub.f32 %v402, %v1117
  %v1181 = vsub.f32 %v406, %v1122
  %v1182 = vsub.f32 %v408, %v1122
  %v1183 = vsub.f32 %v410, %v1127
  %v1184 = vsub.f32 %v412, %v1127
  %v1185 = vsub.f32 %v416, %v1132
  %v1186 = vsub.f32 %v418, %v1132
  %v1187 = vsub.f32 %v420, %v1137
  %v1188 = vsub.f32 %v422, %v1137
  %v1189 = vsub.f32 %v426, %v1142
  %v1190 = vsub.f32 %v428, %v1142
  %v1191 = vsub.f32 %v430, %v1147
  %v1192 = vsub.f32 %v432, %v1147
  %v1193 = vsub.f32 %v436, %v1152
  %v1194 = vsub.f32 %v438, %v1152
  %v1195 = vsub.f32 %v440, %v1157
  %v1196 = vsub.f32 %v442, %v1157
  %v1197 = vsub.f32 %v446, %v1162
  %v1198 = vsub.f32 %v448, %v1162
  %v1199 = vsub.f32 %v450, %v1167
  %v1200 = vsub.f32 %v452, %v1167
  %v1201 = vmul.f32 %v1169, 1.442695
  %v1202 = vpow.pop %v1201
  %v1203 = vmul.f32 %v1170, 1.442695
  %v1204 = vpow.pop %v1203
  %v1205 = vmul.f32 %v1171, 1.442695
  %v1206 = vpow.pop %v1205
  %v1207 = vmul.f32 %v1172, 1.442695
  %v1208 = vpow.pop %v1207
  %v1209 = vmul.f32 %v1173, 1.442695
  %v1210 = vpow.pop %v1209
  %v1211 = vmul.f32 %v1174, 1.442695
  %v1212 = vpow.pop %v1211
  %v1213 = vmul.f32 %v1175, 1.442695
  %v1214 = vpow.pop %v1213
  %v1215 = vmul.f32 %v1176, 1.442695
  %v1216 = vpow.pop %v1215
  %v1217 = vmul.f32 %v1177, 1.442695
  %v1218 = vpow.pop %v1217
  %v1219 = vmul.f32 %v1178, 1.442695
  %v1220 = vpow.pop %v1219
  %v1221 = vmul.f32 %v1179, 1.442695
  %v1222 = vpow.pop %v1221
  %v1223 = vmul.f32 %v1180, 1.442695
  %v1224 = vpow.pop %v1223
  %v1225 = vmul.f32 %v1181, 1.442695
  %v1226 = vpow.pop %v1225
  %v1227 = vmul.f32 %v1182, 1.442695
  %v1228 = vpow.pop %v1227
  %v1229 = vmul.f32 %v1183, 1.442695
  %v1230 = vpow.pop %v1229
  %v1231 = vmul.f32 %v1184, 1.442695
  %v1232 = vpow.pop %v1231
  %v1233 = vmul.f32 %v1185, 1.442695
  %v1234 = vpow.pop %v1233
  %v1235 = vmul.f32 %v1186, 1.442695
  %v1236 = vpow.pop %v1235
  %v1237 = vmul.f32 %v1187, 1.442695
  %v1238 = vpow.pop %v1237
  %v1239 = vmul.f32 %v1188, 1.442695
  %v1240 = vpow.pop %v1239
  %v1241 = vmul.f32 %v1189, 1.442695
  %v1242 = vpow.pop %v1241
  %v1243 = vmul.f32 %v1190, 1.442695
  %v1244 = vpow.pop %v1243
  %v1245 = vmul.f32 %v1191, 1.442695
  %v1246 = vpow.pop %v1245
  %v1247 = vmul.f32 %v1192, 1.442695
  %v1248 = vpow.pop %v1247
  %v1249 = vmul.f32 %v1193, 1.442695
  %v1250 = vpow.pop %v1249
  %v1251 = vmul.f32 %v1194, 1.442695
  %v1252 = vpow.pop %v1251
  %v1253 = vmul.f32 %v1195, 1.442695
  %v1254 = vpow.pop %v1253
  %v1255 = vmul.f32 %v1196, 1.442695
  %v1256 = vpow.pop %v1255
  %v1257 = vmul.f32 %v1197, 1.442695
  %v1258 = vpow.pop %v1257
  %v1259 = vmul.f32 %v1198, 1.442695
  %v1260 = vpow.pop %v1259
  %v1261 = vmul.f32 %v1199, 1.442695
  %v1262 = vpow.pop %v1261
  %v1263 = vmul.f32 %v1200, 1.442695
  %v1264 = vpow.pop %v1263
  %v1265 = vsel %vm865, %v1202, 0.0
  %v1266 = vsel %vm866, %v1204, 0.0
  %v1267 = vsel %vm867, %v1206, 0.0
  %v1268 = vsel %vm868, %v1208, 0.0
  %v1269 = vsel %vm869, %v1210, 0.0
  %v1270 = vsel %vm870, %v1212, 0.0
  %v1271 = vsel %vm871, %v1214, 0.0
  %v1272 = vsel %vm872, %v1216, 0.0
  %v1273 = vsel %vm873, %v1218, 0.0
  %v1274 = vsel %vm874, %v1220, 0.0
  %v1275 = vsel %vm875, %v1222, 0.0
  %v1276 = vsel %vm876, %v1224, 0.0
  %v1277 = vsel %vm877, %v1226, 0.0
  %v1278 = vsel %vm878, %v1228, 0.0
  %v1279 = vsel %vm879, %v1230, 0.0
  %v1280 = vsel %vm880, %v1232, 0.0
  %v1281 = vsel %vm881, %v1234, 0.0
  %v1282 = vsel %vm882, %v1236, 0.0
  %v1283 = vsel %vm883, %v1238, 0.0
  %v1284 = vsel %vm884, %v1240, 0.0
  %v1285 = vsel %vm885, %v1242, 0.0
  %v1286 = vsel %vm886, %v1244, 0.0
  %v1287 = vsel %vm887, %v1246, 0.0
  %v1288 = vsel %vm888, %v1248, 0.0
  %v1289 = vsel %vm889, %v1250, 0.0
  %v1290 = vsel %vm890, %v1252, 0.0
  %v1291 = vsel %vm891, %v1254, 0.0
  %v1292 = vsel %vm892, %v1256, 0.0
  %v1293 = vsel %vm893, %v1258, 0.0
  %v1294 = vsel %vm894, %v1260, 0.0
  %v1295 = vsel %vm895, %v1262, 0.0
  %v1296 = vsel %vm896, %v1264, 0.0
  %v1297 = vadd.f32 %v1265, %v1266
  %1298 = vadd.xlane.f32.xlu0 %v1297
  %v1299 = vpop.xlane.xlu0 %1298
  %v1300 = vadd.f32 %v1267, %v1268
  %1301 = vadd.xlane.f32.xlu0 %v1300
  %v1302 = vpop.xlane.xlu0 %1301
  %v1303 = vadd.f32 %v1269, %v1270
  %1304 = vadd.xlane.f32.xlu0 %v1303
  %v1305 = vpop.xlane.xlu0 %1304
  %v1306 = vadd.f32 %v1271, %v1272
  %1307 = vadd.xlane.f32.xlu0 %v1306
  %v1308 = vpop.xlane.xlu0 %1307
  %v1309 = vadd.f32 %v1273, %v1274
  %1310 = vadd.xlane.f32.xlu0 %v1309
  %v1311 = vpop.xlane.xlu0 %1310
  %v1312 = vadd.f32 %v1275, %v1276
  %1313 = vadd.xlane.f32.xlu0 %v1312
  %v1314 = vpop.xlane.xlu0 %1313
  %v1315 = vadd.f32 %v1277, %v1278
  %1316 = vadd.xlane.f32.xlu0 %v1315
  %v1317 = vpop.xlane.xlu0 %1316
  %v1318 = vadd.f32 %v1279, %v1280
  %1319 = vadd.xlane.f32.xlu0 %v1318
  %v1320 = vpop.xlane.xlu0 %1319
  %v1321 = vadd.f32 %v1281, %v1282
  %1322 = vadd.xlane.f32.xlu0 %v1321
  %v1323 = vpop.xlane.xlu0 %1322
  %v1324 = vadd.f32 %v1283, %v1284
  %1325 = vadd.xlane.f32.xlu0 %v1324
  %v1326 = vpop.xlane.xlu0 %1325
  %v1327 = vadd.f32 %v1285, %v1286
  %1328 = vadd.xlane.f32.xlu0 %v1327
  %v1329 = vpop.xlane.xlu0 %1328
  %v1330 = vadd.f32 %v1287, %v1288
  %1331 = vadd.xlane.f32.xlu0 %v1330
  %v1332 = vpop.xlane.xlu0 %1331
  %v1333 = vadd.f32 %v1289, %v1290
  %1334 = vadd.xlane.f32.xlu0 %v1333
  %v1335 = vpop.xlane.xlu0 %1334
  %v1336 = vadd.f32 %v1291, %v1292
  %1337 = vadd.xlane.f32.xlu0 %v1336
  %v1338 = vpop.xlane.xlu0 %1337
  %v1339 = vadd.f32 %v1293, %v1294
  %1340 = vadd.xlane.f32.xlu0 %v1339
  %v1341 = vpop.xlane.xlu0 %1340
  %v1342 = vadd.f32 %v1295, %v1296
  %1343 = vadd.xlane.f32.xlu0 %v1342
  %v1344 = vpop.xlane.xlu0 %1343
  %v1345 = vadd.f32 %v1073, %v1299
  %v1346 = vadd.f32 %v1074, %v1302
  %v1347 = vadd.f32 %v1075, %v1305
  %v1348 = vadd.f32 %v1076, %v1308
  %v1349 = vadd.f32 %v1077, %v1311
  %v1350 = vadd.f32 %v1078, %v1314
  %v1351 = vadd.f32 %v1079, %v1317
  %v1352 = vadd.f32 %v1080, %v1320
  %v1353 = vadd.f32 %v1081, %v1323
  %v1354 = vadd.f32 %v1082, %v1326
  %v1355 = vadd.f32 %v1083, %v1329
  %v1356 = vadd.f32 %v1084, %v1332
  %v1357 = vadd.f32 %v1085, %v1335
  %v1358 = vadd.f32 %v1086, %v1338
  %v1359 = vadd.f32 %v1087, %v1341
  %v1360 = vadd.f32 %v1088, %v1344
  %1361 = vst.msk [vmem:[#allocation4] sm:$0xff] %vm798, %v1345
  %1362 = vst.msk [vmem:[#allocation4 + $0x8] sm:$0xff] %vm798, %v1346
  %1363 = vst.msk [vmem:[#allocation4 + $0x10] sm:$0xff] %vm798, %v1347
  %1364 = vst.msk [vmem:[#allocation4 + $0x18] sm:$0xff] %vm798, %v1348
  %1365 = vst.msk [vmem:[#allocation4 + $0x20] sm:$0xff] %vm798, %v1349
  %1366 = vst.msk [vmem:[#allocation4 + $0x28] sm:$0xff] %vm798, %v1350
  %1367 = vst.msk [vmem:[#allocation4 + $0x30] sm:$0xff] %vm798, %v1351
  %1368 = vst.msk [vmem:[#allocation4 + $0x38] sm:$0xff] %vm798, %v1352
  %1369 = vst.msk [vmem:[#allocation4 + $0x40] sm:$0xff] %vm798, %v1353
  %1370 = vst.msk [vmem:[#allocation4 + $0x48] sm:$0xff] %vm798, %v1354
  %1371 = vst.msk [vmem:[#allocation4 + $0x50] sm:$0xff] %vm798, %v1355
  %1372 = vst.msk [vmem:[#allocation4 + $0x58] sm:$0xff] %vm798, %v1356
  %1373 = vst.msk [vmem:[#allocation4 + $0x60] sm:$0xff] %vm798, %v1357
  %1374 = vst.msk [vmem:[#allocation4 + $0x68] sm:$0xff] %vm798, %v1358
  %1375 = vst.msk [vmem:[#allocation4 + $0x70] sm:$0xff] %vm798, %v1359
  %1376 = vst.msk [vmem:[#allocation4 + $0x78] sm:$0xff] %vm798, %v1360
  %1377 = vst.msk [vmem:[#allocation3] sm:$0xff] %vm798, %v993
  %1378 = vst.msk [vmem:[#allocation3 + $0x8] sm:$0xff] %vm798, %v994
  %1379 = vst.msk [vmem:[#allocation3 + $0x10] sm:$0xff] %vm798, %v995
  %1380 = vst.msk [vmem:[#allocation3 + $0x18] sm:$0xff] %vm798, %v996
  %1381 = vst.msk [vmem:[#allocation3 + $0x20] sm:$0xff] %vm798, %v997
  %1382 = vst.msk [vmem:[#allocation3 + $0x28] sm:$0xff] %vm798, %v998
  %1383 = vst.msk [vmem:[#allocation3 + $0x30] sm:$0xff] %vm798, %v999
  %1384 = vst.msk [vmem:[#allocation3 + $0x38] sm:$0xff] %vm798, %v1000
  %1385 = vst.msk [vmem:[#allocation3 + $0x40] sm:$0xff] %vm798, %v1001
  %1386 = vst.msk [vmem:[#allocation3 + $0x48] sm:$0xff] %vm798, %v1002
  %1387 = vst.msk [vmem:[#allocation3 + $0x50] sm:$0xff] %vm798, %v1003
  %1388 = vst.msk [vmem:[#allocation3 + $0x58] sm:$0xff] %vm798, %v1004
  %1389 = vst.msk [vmem:[#allocation3 + $0x60] sm:$0xff] %vm798, %v1005
  %1390 = vst.msk [vmem:[#allocation3 + $0x68] sm:$0xff] %vm798, %v1006
  %1391 = vst.msk [vmem:[#allocation3 + $0x70] sm:$0xff] %vm798, %v1007
  %1392 = vst.msk [vmem:[#allocation3 + $0x78] sm:$0xff] %vm798, %v1008
  // Predicated region
  $region18: #{memory_bank_forward.1} parent=0 // pred_check
    %p1393 = pneg %p40
  $region19: #{memory_bank_forward.1} parent=0 // pred_check_branch
    %1395 = sbr.rel (%p1393) target = $region21
  $region20: #{memory_bank_forward.1} parent=0 // pred_region
    %v1396 = vld [vmem:[#allocation3] sm:$0xff]
    %v1397 = vld [vmem:[#allocation3 + $0x8] sm:$0xff]
    %v1398 = vld [vmem:[#allocation3 + $0x10] sm:$0xff]
    %v1399 = vld [vmem:[#allocation3 + $0x18] sm:$0xff]
    %v1400 = vld [vmem:[#allocation3 + $0x20] sm:$0xff]
    %v1401 = vld [vmem:[#allocation3 + $0x28] sm:$0xff]
    %v1402 = vld [vmem:[#allocation3 + $0x30] sm:$0xff]
    %v1403 = vld [vmem:[#allocation3 + $0x38] sm:$0xff]
    %v1404 = vld [vmem:[#allocation3 + $0x40] sm:$0xff]
    %v1405 = vld [vmem:[#allocation3 + $0x48] sm:$0xff]
    %v1406 = vld [vmem:[#allocation3 + $0x50] sm:$0xff]
    %v1407 = vld [vmem:[#allocation3 + $0x58] sm:$0xff]
    %v1408 = vld [vmem:[#allocation3 + $0x60] sm:$0xff]
    %v1409 = vld [vmem:[#allocation3 + $0x68] sm:$0xff]
    %v1410 = vld [vmem:[#allocation3 + $0x70] sm:$0xff]
    %v1411 = vld [vmem:[#allocation3 + $0x78] sm:$0xff]
    %1413 = vset.pattern.permute.xlu0 0
    %1414 = vperm.xlu0 %1413, %v1396
    %v1415 = vpop.permute.xlu0 %1414
    %1418 = vset.pattern.permute.xlu0 0
    %1419 = vperm.xlu0 %1418, %v1397
    %v1420 = vpop.permute.xlu0 %1419
    %1423 = vset.pattern.permute.xlu0 0
    %1424 = vperm.xlu0 %1423, %v1398
    %v1425 = vpop.permute.xlu0 %1424
    %1428 = vset.pattern.permute.xlu0 0
    %1429 = vperm.xlu0 %1428, %v1399
    %v1430 = vpop.permute.xlu0 %1429
    %1433 = vset.pattern.permute.xlu0 0
    %1434 = vperm.xlu0 %1433, %v1400
    %v1435 = vpop.permute.xlu0 %1434
    %1438 = vset.pattern.permute.xlu0 0
    %1439 = vperm.xlu0 %1438, %v1401
    %v1440 = vpop.permute.xlu0 %1439
    %1443 = vset.pattern.permute.xlu0 0
    %1444 = vperm.xlu0 %1443, %v1402
    %v1445 = vpop.permute.xlu0 %1444
    %1448 = vset.pattern.permute.xlu0 0
    %1449 = vperm.xlu0 %1448, %v1403
    %v1450 = vpop.permute.xlu0 %1449
    %1453 = vset.pattern.permute.xlu0 0
    %1454 = vperm.xlu0 %1453, %v1404
    %v1455 = vpop.permute.xlu0 %1454
    %1458 = vset.pattern.permute.xlu0 0
    %1459 = vperm.xlu0 %1458, %v1405
    %v1460 = vpop.permute.xlu0 %1459
    %1463 = vset.pattern.permute.xlu0 0
    %1464 = vperm.xlu0 %1463, %v1406
    %v1465 = vpop.permute.xlu0 %1464
    %1468 = vset.pattern.permute.xlu0 0
    %1469 = vperm.xlu0 %1468, %v1407
    %v1470 = vpop.permute.xlu0 %1469
    %1473 = vset.pattern.permute.xlu0 0
    %1474 = vperm.xlu0 %1473, %v1408
    %v1475 = vpop.permute.xlu0 %1474
    %1478 = vset.pattern.permute.xlu0 0
    %1479 = vperm.xlu0 %1478, %v1409
    %v1480 = vpop.permute.xlu0 %1479
    %1483 = vset.pattern.permute.xlu0 0
    %1484 = vperm.xlu0 %1483, %v1410
    %v1485 = vpop.permute.xlu0 %1484
    %1488 = vset.pattern.permute.xlu0 0
    %1489 = vperm.xlu0 %1488, %v1411
    %v1490 = vpop.permute.xlu0 %1489
    %1492 = vst [vmem:[%s3] sm:$0xff] %v1415
    %1493 = vst [vmem:[%s3 + $0x8] sm:$0xff] %v1420
    %1494 = vst [vmem:[%s3 + $0x10] sm:$0xff] %v1425
    %1495 = vst [vmem:[%s3 + $0x18] sm:$0xff] %v1430
    %1496 = vst [vmem:[%s3 + $0x20] sm:$0xff] %v1435
    %1497 = vst [vmem:[%s3 + $0x28] sm:$0xff] %v1440
    %1498 = vst [vmem:[%s3 + $0x30] sm:$0xff] %v1445
    %1499 = vst [vmem:[%s3 + $0x38] sm:$0xff] %v1450
    %1500 = vst [vmem:[%s3 + $0x40] sm:$0xff] %v1455
    %1501 = vst [vmem:[%s3 + $0x48] sm:$0xff] %v1460
    %1502 = vst [vmem:[%s3 + $0x50] sm:$0xff] %v1465
    %1503 = vst [vmem:[%s3 + $0x58] sm:$0xff] %v1470
    %1504 = vst [vmem:[%s3 + $0x60] sm:$0xff] %v1475
    %1505 = vst [vmem:[%s3 + $0x68] sm:$0xff] %v1480
    %1506 = vst [vmem:[%s3 + $0x70] sm:$0xff] %v1485
    %1507 = vst [vmem:[%s3 + $0x78] sm:$0xff] %v1490
    %v1508 = vld [vmem:[#allocation4] sm:$0xff]
    %v1509 = vld [vmem:[#allocation4 + $0x8] sm:$0xff]
    %v1510 = vld [vmem:[#allocation4 + $0x10] sm:$0xff]
    %v1511 = vld [vmem:[#allocation4 + $0x18] sm:$0xff]
    %v1512 = vld [vmem:[#allocation4 + $0x20] sm:$0xff]
    %v1513 = vld [vmem:[#allocation4 + $0x28] sm:$0xff]
    %v1514 = vld [vmem:[#allocation4 + $0x30] sm:$0xff]
    %v1515 = vld [vmem:[#allocation4 + $0x38] sm:$0xff]
    %v1516 = vld [vmem:[#allocation4 + $0x40] sm:$0xff]
    %v1517 = vld [vmem:[#allocation4 + $0x48] sm:$0xff]
    %v1518 = vld [vmem:[#allocation4 + $0x50] sm:$0xff]
    %v1519 = vld [vmem:[#allocation4 + $0x58] sm:$0xff]
    %v1520 = vld [vmem:[#allocation4 + $0x60] sm:$0xff]
    %v1521 = vld [vmem:[#allocation4 + $0x68] sm:$0xff]
    %v1522 = vld [vmem:[#allocation4 + $0x70] sm:$0xff]
    %v1523 = vld [vmem:[#allocation4 + $0x78] sm:$0xff]
    %1525 = vset.pattern.permute.xlu0 0
    %1526 = vperm.xlu0 %1525, %v1508
    %v1527 = vpop.permute.xlu0 %1526
    %1530 = vset.pattern.permute.xlu0 0
    %1531 = vperm.xlu0 %1530, %v1509
    %v1532 = vpop.permute.xlu0 %1531
    %1535 = vset.pattern.permute.xlu0 0
    %1536 = vperm.xlu0 %1535, %v1510
    %v1537 = vpop.permute.xlu0 %1536
    %1540 = vset.pattern.permute.xlu0 0
    %1541 = vperm.xlu0 %1540, %v1511
    %v1542 = vpop.permute.xlu0 %1541
    %1545 = vset.pattern.permute.xlu0 0
    %1546 = vperm.xlu0 %1545, %v1512
    %v1547 = vpop.permute.xlu0 %1546
    %1550 = vset.pattern.permute.xlu0 0
    %1551 = vperm.xlu0 %1550, %v1513
    %v1552 = vpop.permute.xlu0 %1551
    %1555 = vset.pattern.permute.xlu0 0
    %1556 = vperm.xlu0 %1555, %v1514
    %v1557 = vpop.permute.xlu0 %1556
    %1560 = vset.pattern.permute.xlu0 0
    %1561 = vperm.xlu0 %1560, %v1515
    %v1562 = vpop.permute.xlu0 %1561
    %1565 = vset.pattern.permute.xlu0 0
    %1566 = vperm.xlu0 %1565, %v1516
    %v1567 = vpop.permute.xlu0 %1566
    %1570 = vset.pattern.permute.xlu0 0
    %1571 = vperm.xlu0 %1570, %v1517
    %v1572 = vpop.permute.xlu0 %1571
    %1575 = vset.pattern.permute.xlu0 0
    %1576 = vperm.xlu0 %1575, %v1518
    %v1577 = vpop.permute.xlu0 %1576
    %1580 = vset.pattern.permute.xlu0 0
    %1581 = vperm.xlu0 %1580, %v1519
    %v1582 = vpop.permute.xlu0 %1581
    %1585 = vset.pattern.permute.xlu0 0
    %1586 = vperm.xlu0 %1585, %v1520
    %v1587 = vpop.permute.xlu0 %1586
    %1590 = vset.pattern.permute.xlu0 0
    %1591 = vperm.xlu0 %1590, %v1521
    %v1592 = vpop.permute.xlu0 %1591
    %1595 = vset.pattern.permute.xlu0 0
    %1596 = vperm.xlu0 %1595, %v1522
    %v1597 = vpop.permute.xlu0 %1596
    %1600 = vset.pattern.permute.xlu0 0
    %1601 = vperm.xlu0 %1600, %v1523
    %v1602 = vpop.permute.xlu0 %1601
    %1604 = vst [vmem:[%s4] sm:$0xff] %v1527
    %1605 = vst [vmem:[%s4 + $0x8] sm:$0xff] %v1532
    %1606 = vst [vmem:[%s4 + $0x10] sm:$0xff] %v1537
    %1607 = vst [vmem:[%s4 + $0x18] sm:$0xff] %v1542
    %1608 = vst [vmem:[%s4 + $0x20] sm:$0xff] %v1547
    %1609 = vst [vmem:[%s4 + $0x28] sm:$0xff] %v1552
    %1610 = vst [vmem:[%s4 + $0x30] sm:$0xff] %v1557
    %1611 = vst [vmem:[%s4 + $0x38] sm:$0xff] %v1562
    %1612 = vst [vmem:[%s4 + $0x40] sm:$0xff] %v1567
    %1613 = vst [vmem:[%s4 + $0x48] sm:$0xff] %v1572
    %1614 = vst [vmem:[%s4 + $0x50] sm:$0xff] %v1577
    %1615 = vst [vmem:[%s4 + $0x58] sm:$0xff] %v1582
    %1616 = vst [vmem:[%s4 + $0x60] sm:$0xff] %v1587
    %1617 = vst [vmem:[%s4 + $0x68] sm:$0xff] %v1592
    %1618 = vst [vmem:[%s4 + $0x70] sm:$0xff] %v1597
    %1619 = vst [vmem:[%s4 + $0x78] sm:$0xff] %v1602
    %v1620 = vld [vmem:[#allocation5] sm:$0xff]
    %v1621 = vld [vmem:[#allocation5 + $0x8] sm:$0xff]
    %v1622 = vld [vmem:[#allocation5 + $0x10] sm:$0xff]
    %v1623 = vld [vmem:[#allocation5 + $0x18] sm:$0xff]
    %v1624 = vld [vmem:[#allocation5 + $0x20] sm:$0xff]
    %v1625 = vld [vmem:[#allocation5 + $0x28] sm:$0xff]
    %v1626 = vld [vmem:[#allocation5 + $0x30] sm:$0xff]
    %v1627 = vld [vmem:[#allocation5 + $0x38] sm:$0xff]
    %v1628 = vld [vmem:[#allocation5 + $0x40] sm:$0xff]
    %v1629 = vld [vmem:[#allocation5 + $0x48] sm:$0xff]
    %v1630 = vld [vmem:[#allocation5 + $0x50] sm:$0xff]
    %v1631 = vld [vmem:[#allocation5 + $0x58] sm:$0xff]
    %v1632 = vld [vmem:[#allocation5 + $0x60] sm:$0xff]
    %v1633 = vld [vmem:[#allocation5 + $0x68] sm:$0xff]
    %v1634 = vld [vmem:[#allocation5 + $0x70] sm:$0xff]
    %v1635 = vld [vmem:[#allocation5 + $0x78] sm:$0xff]
    %1637 = vset.pattern.permute.xlu0 0
    %1638 = vperm.xlu0 %1637, %v1620
    %v1639 = vpop.permute.xlu0 %1638
    %1642 = vset.pattern.permute.xlu0 0
    %1643 = vperm.xlu0 %1642, %v1621
    %v1644 = vpop.permute.xlu0 %1643
    %1647 = vset.pattern.permute.xlu0 0
    %1648 = vperm.xlu0 %1647, %v1622
    %v1649 = vpop.permute.xlu0 %1648
    %1652 = vset.pattern.permute.xlu0 0
    %1653 = vperm.xlu0 %1652, %v1623
    %v1654 = vpop.permute.xlu0 %1653
    %1657 = vset.pattern.permute.xlu0 0
    %1658 = vperm.xlu0 %1657, %v1624
    %v1659 = vpop.permute.xlu0 %1658
    %1662 = vset.pattern.permute.xlu0 0
    %1663 = vperm.xlu0 %1662, %v1625
    %v1664 = vpop.permute.xlu0 %1663
    %1667 = vset.pattern.permute.xlu0 0
    %1668 = vperm.xlu0 %1667, %v1626
    %v1669 = vpop.permute.xlu0 %1668
    %1672 = vset.pattern.permute.xlu0 0
    %1673 = vperm.xlu0 %1672, %v1627
    %v1674 = vpop.permute.xlu0 %1673
    %1677 = vset.pattern.permute.xlu0 0
    %1678 = vperm.xlu0 %1677, %v1628
    %v1679 = vpop.permute.xlu0 %1678
    %1682 = vset.pattern.permute.xlu0 0
    %1683 = vperm.xlu0 %1682, %v1629
    %v1684 = vpop.permute.xlu0 %1683
    %1687 = vset.pattern.permute.xlu0 0
    %1688 = vperm.xlu0 %1687, %v1630
    %v1689 = vpop.permute.xlu0 %1688
    %1692 = vset.pattern.permute.xlu0 0
    %1693 = vperm.xlu0 %1692, %v1631
    %v1694 = vpop.permute.xlu0 %1693
    %1697 = vset.pattern.permute.xlu0 0
    %1698 = vperm.xlu0 %1697, %v1632
    %v1699 = vpop.permute.xlu0 %1698
    %1702 = vset.pattern.permute.xlu0 0
    %1703 = vperm.xlu0 %1702, %v1633
    %v1704 = vpop.permute.xlu0 %1703
    %1707 = vset.pattern.permute.xlu0 0
    %1708 = vperm.xlu0 %1707, %v1634
    %v1709 = vpop.permute.xlu0 %1708
    %1712 = vset.pattern.permute.xlu0 0
    %1713 = vperm.xlu0 %1712, %v1635
    %v1714 = vpop.permute.xlu0 %1713
    %1716 = vst [vmem:[%s5] sm:$0xff] %v1639
    %1717 = vst [vmem:[%s5 + $0x8] sm:$0xff] %v1644
    %1718 = vst [vmem:[%s5 + $0x10] sm:$0xff] %v1649
    %1719 = vst [vmem:[%s5 + $0x18] sm:$0xff] %v1654
    %1720 = vst [vmem:[%s5 + $0x20] sm:$0xff] %v1659
    %1721 = vst [vmem:[%s5 + $0x28] sm:$0xff] %v1664
    %1722 = vst [vmem:[%s5 + $0x30] sm:$0xff] %v1669
    %1723 = vst [vmem:[%s5 + $0x38] sm:$0xff] %v1674
    %1724 = vst [vmem:[%s5 + $0x40] sm:$0xff] %v1679
    %1725 = vst [vmem:[%s5 + $0x48] sm:$0xff] %v1684
    %1726 = vst [vmem:[%s5 + $0x50] sm:$0xff] %v1689
    %1727 = vst [vmem:[%s5 + $0x58] sm:$0xff] %v1694
    %1728 = vst [vmem:[%s5 + $0x60] sm:$0xff] %v1699
    %1729 = vst [vmem:[%s5 + $0x68] sm:$0xff] %v1704
    %1730 = vst [vmem:[%s5 + $0x70] sm:$0xff] %v1709
    %1731 = vst [vmem:[%s5 + $0x78] sm:$0xff] %v1714
  $region21: #{memory_bank_forward.1} parent=0 // pred_fallthru
    _
  // Predicated region
  $region22: #{memory_bank_forward.1} parent=0 // pred_check
    _
  $region23: #{memory_bank_forward.1} parent=0 // pred_check_branch
    %1733 = sbr.rel (0) target = $region25
  $region24: #{memory_bank_forward.1} parent=0 // pred_region
    _
  $region25: #{memory_bank_forward.1} parent=0 // pred_fallthru
    _
  // Predicated region
  $region26: #{memory_bank_forward.1} parent=0 // pred_check
    _
  $region27: #{memory_bank_forward.1} parent=0 // pred_check_branch
    %1735 = sbr.rel (0) target = $region29
  $region28: #{memory_bank_forward.1} parent=0 // pred_region
    _
  $region29: #{memory_bank_forward.1} parent=0 // pred_fallthru
    _
  // Predicated region
  $region30: #{memory_bank_forward.1} parent=0 // pred_check
    _
  $region31: #{memory_bank_forward.1} parent=0 // pred_check_branch
    %1737 = sbr.rel (0) target = $region33
  $region32: #{memory_bank_forward.1} parent=0 // pred_region
    _
  $region33: #{memory_bank_forward.1} parent=0 // pred_fallthru
    _
  // Predicated region
  $region34: #{memory_bank_forward.1} parent=0 // pred_check
    _
  $region35: #{memory_bank_forward.1} parent=0 // pred_check_branch
    %1739 = sbr.rel (0) target = $region37
  $region36: #{memory_bank_forward.1} parent=0 // pred_region
    _
  $region37: #{memory_bank_forward.1} parent=0 // pred_fallthru
    _
  // Predicated region
  $region38: #{memory_bank_forward.1} parent=0 // pred_check
    _
  $region39: #{memory_bank_forward.1} parent=0 // pred_check_branch
    %1741 = sbr.rel (0) target = $region41
  $region40: #{memory_bank_forward.1} parent=0 // pred_region
    _
  $region41: #{memory_bank_forward.1} parent=0 // pred_fallthru
    _
  // Predicated region
  $region42: #{memory_bank_forward.1} parent=0 // pred_check
    _
  $region43: #{memory_bank_forward.1} parent=0 // pred_check_branch
    %1743 = sbr.rel (0) target = $region45
  $region44: #{memory_bank_forward.1} parent=0 // pred_region
    _
  $region45: #{memory_bank_forward.1} parent=0 // pred_fallthru
    _

</llo_original>
